<compile_context>
chip_gen: v7x
topology: tpu7x:2x2x1
jax: 0.10.0
libtpu: 0.0.40
codegen_flags: <defaults>
</compile_context>

<pallas_src>
import jax
import jax.numpy as jnp
from jax.experimental import pallas as pl
from jax.experimental.pallas import tpu as pltpu

EPS = 1e-5
NEG_SLOPE = 0.2
HIGHEST = jax.lax.Precision.HIGHEST


def _leaky(x):
    return jnp.where(x > 0, x, NEG_SLOPE * x)


def _bn_leaky(y, g_ref, bt_ref):
    """Training-mode BatchNorm1d (biased batch stats over batch+length) +
    LeakyReLU(0.2).  y: (B*L, C) f32, channels on lanes.  Single-pass stats:
    sum and sum-of-squares are independent reductions (no mean->var chain)."""
    n = y.shape[0]
    inv_n = 1.0 / n
    s1 = jnp.sum(y, axis=0, keepdims=True)          # (1, C)
    s2 = jnp.sum(y * y, axis=0, keepdims=True)      # (1, C)
    mean = s1 * inv_n
    var = s2 * inv_n - mean * mean
    scale = jax.lax.rsqrt(var + EPS) * g_ref[...]
    shift = bt_ref[...] - mean * scale
    return _leaky(y * scale + shift)
    # TODO(synk): running_mean / running_var buffer updates (training-only side
    # effect) are not materialized; the forward output does not depend on them.


def _disc_kernel(x_ref,
                 w1_ref, b1_ref,
                 w2_ref, b2_ref, g2_ref, bt2_ref,
                 w3_ref, b3_ref, g3_ref, bt3_ref,
                 w4_ref, b4_ref,
                 fw_ref, fb_ref,
                 out_ref,
                 xp_ref, h1_ref, h2_ref, h3_ref):
    B, L, _ = x_ref.shape
    L1 = h1_ref.shape[1] - 2
    L2 = h2_ref.shape[1] - 2
    L3 = h3_ref.shape[1]
    L4 = (L3 - 3) // 2 + 1
    C1, C2, C3 = h1_ref.shape[2], h2_ref.shape[2], h3_ref.shape[2]

    # Zero the padded scratch buffers once: the border rows ARE the conv zero
    # padding; interior rows are overwritten below.  (Tiny: < 30 KiB total.)
    xp_ref[...] = jnp.zeros_like(xp_ref)
    h1_ref[...] = jnp.zeros_like(h1_ref)
    h2_ref[...] = jnp.zeros_like(h2_ref)

    # ---- Conv1d(1, 16, k3, s2, p1) + LeakyReLU: VPU broadcast FMAs ---------
    xp_ref[:, pl.ds(1, L), :] = x_ref[...]
    h1 = b1_ref[...]                                       # (1, 1, 16)
    for k in range(3):                                     # static tap unroll
        tap = xp_ref[:, pl.ds(k, L1, stride=2), :]         # (B, L1, 1)
        h1 = h1 + tap * w1_ref[k]                          # (B, L1, 16) f32
    h1_ref[:, pl.ds(1, L1), :] = _leaky(h1)

    # ---- Conv1d(16, 32, k3, s2, p1) + BatchNorm1d(32) + LeakyReLU ----------
    y2 = b2_ref[...]                                       # (1, 32)
    for k in range(3):
        g = h1_ref[:, pl.ds(k, L2, stride=2), :]           # strided sublane load
        g = g.reshape(B * L2, C1).astype(jnp.bfloat16)
        y2 = y2 + jnp.dot(g, w2_ref[k], preferred_element_type=jnp.float32)
    h2 = _bn_leaky(y2, g2_ref, bt2_ref)                    # (B*L2, 32) f32
    h2_ref[:, pl.ds(1, L2), :] = h2.reshape(B, L2, C2)

    # ---- Conv1d(32, 64, k3, s2, p1) + BatchNorm1d(64) + LeakyReLU ----------
    y3 = b3_ref[...]                                       # (1, 64)
    for k in range(3):
        g = h2_ref[:, pl.ds(k, L3, stride=2), :]
        g = g.reshape(B * L3, C2).astype(jnp.bfloat16)
        y3 = y3 + jnp.dot(g, w3_ref[k], preferred_element_type=jnp.float32)
    h3 = _bn_leaky(y3, g3_ref, bt3_ref)                    # (B*L3, 64) f32
    h3_ref[...] = h3.reshape(B, L3, C3)

    # ---- Conv1d(64, 1, k3, s2, p0): Cout=1 -> VPU mult + lane reduce -------
    y4 = b4_ref[...]                                       # (1, 1)
    for k in range(3):
        g = h3_ref[:, pl.ds(k, L4, stride=2), :]           # (B, L4, 64) f32
        y4 = y4 + jnp.sum(g * w4_ref[k], axis=-1)          # (B, L4)

    # Flatten + AdaptiveAvgPool1d(1) + Linear(1,1) + sigmoid
    pooled = jnp.sum(y4, axis=-1, keepdims=True) * (1.0 / L4)   # (B, 1)
    logit = pooled * fw_ref[...] + fb_ref[...]
    out_ref[...] = 1.0 / (1.0 + jnp.exp(-logit))


@jax.jit
def discriminator_forward(x, params):
    """x: (B, 1, L) float.  Returns (B, 1) sigmoid probabilities."""
    (w1, b1, w2, b2, g2, bt2, w3, b3, g3, bt3, w4, b4, fw, fb) = params
    B, cin, L = x.shape
    assert cin == 1 and L % 2 == 0
    L1 = (L + 2 - 3) // 2 + 1
    L2 = (L1 + 2 - 3) // 2 + 1
    L3 = (L2 + 2 - 3) // 2 + 1
    L4 = (L3 - 3) // 2 + 1
    assert L4 >= 1
    c1, c2, c3 = w1.shape[0], w2.shape[0], w3.shape[0]

    def taps(w, dtype):      # (Cout, Cin, 3) -> (3, Cin, Cout), tap-major
        return jnp.transpose(w, (2, 1, 0)).astype(dtype)

    def row(v, c):           # (C,) -> (1, C) f32, channels on lanes
        return v.reshape(1, c).astype(jnp.float32)

    args = (
        x.astype(jnp.float32).reshape(B, L, 1),            # length on sublanes
        taps(w1, jnp.float32).reshape(3, 1, 1, c1),        # layer-1 VPU taps
        b1.reshape(1, 1, c1).astype(jnp.float32),
        taps(w2, jnp.bfloat16), row(b2, c2), row(g2, c2), row(bt2, c2),
        taps(w3, jnp.bfloat16), row(b3, c3), row(g3, c3), row(bt3, c3),
        taps(w4, jnp.float32).reshape(3, 1, 1, c3),        # layer-4 VPU taps
        b4.reshape(1, 1).astype(jnp.float32),
        fw.reshape(1, 1).astype(jnp.float32),
        fb.reshape(1, 1).astype(jnp.float32),
    )

    vmem = pl.BlockSpec(memory_space=pltpu.MemorySpace.VMEM)
    return pl.pallas_call(
        _disc_kernel,
        out_shape=jax.ShapeDtypeStruct((B, 1), jnp.float32),
        in_specs=[vmem] * len(args),
        out_specs=vmem,
        scratch_shapes=[
            pltpu.VMEM((B, L + 2, 1), jnp.float32),        # zero-padded input
            pltpu.VMEM((B, L1 + 2, c1), jnp.float32),      # zero-padded h1
            pltpu.VMEM((B, L2 + 2, c2), jnp.float32),      # zero-padded h2
            pltpu.VMEM((B, L3, c3), jnp.float32),          # h3 (layer 4: pad=0)
        ],
    )(*args)


def reference_forward(x, params):
    """Pure-JAX f32 reference (matches the PyTorch module in train mode)."""
    (w1, b1, w2, b2, g2, bt2, w3, b3, g3, bt3, w4, b4, fw, fb) = params

    def conv(h, w, b, pad):
        y = jax.lax.conv_general_dilated(
            h, w, window_strides=(2,), padding=[(pad, pad)],
            dimension_numbers=("NCH", "OIH", "NCH"), precision=HIGHEST)
        return y + b[None, :, None]

    def bn(h, g, bt):
        mean = jnp.mean(h, axis=(0, 2), keepdims=True)
        var = jnp.mean((h - mean) ** 2, axis=(0, 2), keepdims=True)
        return (h - mean) / jnp.sqrt(var + EPS) * g[None, :, None] + bt[None, :, None]

    lr = lambda t: jnp.where(t > 0, t, NEG_SLOPE * t)
    h = lr(conv(x, w1, b1, 1))
    h = lr(bn(conv(h, w2, b2, 1), g2, bt2))
    h = lr(bn(conv(h, w3, b3, 1), g3, bt3))
    h = conv(h, w4, b4, 0)                                  # (B, 1, L4)
    pooled = jnp.mean(h.reshape(h.shape[0], -1), axis=1, keepdims=True)
    logit = pooled @ fw.T + fb
    return jax.nn.sigmoid(logit)


if __name__ == "__main__":
    key = jax.random.PRNGKey(0)
    ks = jax.random.split(key, 16)
    B, L = 2, 128
    x = jax.random.normal(ks[0], (B, 1, L), jnp.float32)

    def init(k, shape, scale=0.2):
        return scale * jax.random.normal(k, shape, jnp.float32)

    params = (
        init(ks[1], (16, 1, 3)),            init(ks[2], (16,), 0.05),
        init(ks[3], (32, 16, 3)),           init(ks[4], (32,), 0.05),
        1.0 + init(ks[5], (32,), 0.1),      init(ks[6], (32,), 0.1),
        init(ks[7], (64, 32, 3)),           init(ks[8], (64,), 0.05),
        1.0 + init(ks[9], (64,), 0.1),      init(ks[10], (64,), 0.1),
        init(ks[11], (1, 64, 3)),           init(ks[12], (1,), 0.05),
        init(ks[13], (1, 1)),               init(ks[14], (1,), 0.05),
    )

    out = jax.block_until_ready(discriminator_forward(x, params))
    ref = jax.block_until_ready(reference_forward(x, params))
    assert out.shape == (B, 1), out.shape
    # Layers 2/3 use bf16 MXU operands (f32 accumulation); the reference is
    # full-f32 HIGHEST.  Structural errors would be >> 1e-2.
    assert jnp.max(jnp.abs(out - ref)) < 3e-3, (out, ref)
    print("KERNEL_OK")
</pallas_src>

<mosaic_0001>
module attributes {stable_mosaic.version = 11 : i64} {
  func.func @_disc_kernel(%arg0: memref<2x128x1xf32, #tpu.memory_space<vmem>>, %arg1: memref<3x1x1x16xf32, #tpu.memory_space<vmem>>, %arg2: memref<1x1x16xf32, #tpu.memory_space<vmem>>, %arg3: memref<3x16x32xbf16, #tpu.memory_space<vmem>>, %arg4: memref<1x32xf32, #tpu.memory_space<vmem>>, %arg5: memref<1x32xf32, #tpu.memory_space<vmem>>, %arg6: memref<1x32xf32, #tpu.memory_space<vmem>>, %arg7: memref<3x32x64xbf16, #tpu.memory_space<vmem>>, %arg8: memref<1x64xf32, #tpu.memory_space<vmem>>, %arg9: memref<1x64xf32, #tpu.memory_space<vmem>>, %arg10: memref<1x64xf32, #tpu.memory_space<vmem>>, %arg11: memref<3x1x1x64xf32, #tpu.memory_space<vmem>>, %arg12: memref<1x1xf32, #tpu.memory_space<vmem>>, %arg13: memref<1x1xf32, #tpu.memory_space<vmem>>, %arg14: memref<1x1xf32, #tpu.memory_space<vmem>>, %arg15: memref<2x1xf32, #tpu.memory_space<vmem>>, %arg16: memref<2x130x1xf32, #tpu.memory_space<vmem>>, %arg17: memref<2x66x16xf32, #tpu.memory_space<vmem>>, %arg18: memref<2x34x32xf32, #tpu.memory_space<vmem>>, %arg19: memref<2x16x64xf32, #tpu.memory_space<vmem>>) attributes {dimension_semantics = [], scalar_prefetch = 0 : i64, scratch_operands = 4 : i64, tpu.core_type = #tpu.core_type<tc>} {
    %cst = arith.constant 0.000000e+00 : f32
    %0 = vector.broadcast %cst : f32 to vector<2x130x1xf32>
    %c0 = arith.constant 0 : index
    %c0_0 = arith.constant 0 : index
    %c0_1 = arith.constant 0 : index
    %1 = vector.load %arg16[%c0, %c0_0, %c0_1] : memref<2x130x1xf32, #tpu.memory_space<vmem>>, vector<2x130x1xf32>
    tpu.vector_store %arg16[%c0, %c0_0, %c0_1], %0 {strides = array<i32>} : memref<2x130x1xf32, #tpu.memory_space<vmem>>, vector<2x130x1xf32>,
    %cst_2 = arith.constant 0.000000e+00 : f32
    %2 = vector.broadcast %cst_2 : f32 to vector<2x66x16xf32>
    %c0_3 = arith.constant 0 : index
    %c0_4 = arith.constant 0 : index
    %c0_5 = arith.constant 0 : index
    %3 = vector.load %arg17[%c0_3, %c0_4, %c0_5] : memref<2x66x16xf32, #tpu.memory_space<vmem>>, vector<2x66x16xf32>
    tpu.vector_store %arg17[%c0_3, %c0_4, %c0_5], %2 {strides = array<i32>} : memref<2x66x16xf32, #tpu.memory_space<vmem>>, vector<2x66x16xf32>,
    %cst_6 = arith.constant 0.000000e+00 : f32
    %4 = vector.broadcast %cst_6 : f32 to vector<2x34x32xf32>
    %c0_7 = arith.constant 0 : index
    %c0_8 = arith.constant 0 : index
    %c0_9 = arith.constant 0 : index
    %5 = vector.load %arg18[%c0_7, %c0_8, %c0_9] : memref<2x34x32xf32, #tpu.memory_space<vmem>>, vector<2x34x32xf32>
    tpu.vector_store %arg18[%c0_7, %c0_8, %c0_9], %4 {strides = array<i32>} : memref<2x34x32xf32, #tpu.memory_space<vmem>>, vector<2x34x32xf32>,
    %c0_10 = arith.constant 0 : index
    %c0_11 = arith.constant 0 : index
    %c0_12 = arith.constant 0 : index
    %6 = vector.load %arg0[%c0_10, %c0_11, %c0_12] : memref<2x128x1xf32, #tpu.memory_space<vmem>>, vector<2x128x1xf32>
    %c0_13 = arith.constant 0 : index
    %c1 = arith.constant 1 : index
    %c0_14 = arith.constant 0 : index
    %7 = vector.load %arg16[%c0_13, %c1, %c0_14] : memref<2x130x1xf32, #tpu.memory_space<vmem>>, vector<2x128x1xf32>
    tpu.vector_store %arg16[%c0_13, %c1, %c0_14], %6 {strides = array<i32>} : memref<2x130x1xf32, #tpu.memory_space<vmem>>, vector<2x128x1xf32>,
    %c0_15 = arith.constant 0 : index
    %c0_16 = arith.constant 0 : index
    %c0_17 = arith.constant 0 : index
    %8 = vector.load %arg2[%c0_15, %c0_16, %c0_17] : memref<1x1x16xf32, #tpu.memory_space<vmem>>, vector<1x1x16xf32>
    %c0_18 = arith.constant 0 : index
    %c0_19 = arith.constant 0 : index
    %c0_20 = arith.constant 0 : index
    %9 = tpu.strided_load %arg16[%c0_18, %c0_19, %c0_20] {strides = array<i32: 1, 2, 1>} : memref<2x130x1xf32, #tpu.memory_space<vmem>>, vector<2x64x1xf32>
    %c0_21 = arith.constant 0 : index
    %c0_22 = arith.constant 0 : index
    %c0_23 = arith.constant 0 : index
    %c0_24 = arith.constant 0 : index
    %10 = vector.load %arg1[%c0_21, %c0_22, %c0_23, %c0_24] : memref<3x1x1x16xf32, #tpu.memory_space<vmem>>, vector<1x1x1x16xf32>
    %11 = vector.shape_cast %10 : vector<1x1x1x16xf32> to vector<1x1x16xf32>
    %12 = vector.broadcast %9 : vector<2x64x1xf32> to vector<2x64x16xf32>
    %13 = vector.broadcast %11 : vector<1x1x16xf32> to vector<2x64x16xf32>
    %14 = arith.mulf %12, %13 : vector<2x64x16xf32>
    %15 = vector.broadcast %8 : vector<1x1x16xf32> to vector<2x64x16xf32>
    %16 = arith.addf %15, %14 : vector<2x64x16xf32>
    %c0_25 = arith.constant 0 : index
    %c1_26 = arith.constant 1 : index
    %c0_27 = arith.constant 0 : index
    %17 = tpu.strided_load %arg16[%c0_25, %c1_26, %c0_27] {strides = array<i32: 1, 2, 1>} : memref<2x130x1xf32, #tpu.memory_space<vmem>>, vector<2x64x1xf32>
    %c1_28 = arith.constant 1 : index
    %c0_29 = arith.constant 0 : index
    %c0_30 = arith.constant 0 : index
    %c0_31 = arith.constant 0 : index
    %18 = vector.load %arg1[%c1_28, %c0_29, %c0_30, %c0_31] : memref<3x1x1x16xf32, #tpu.memory_space<vmem>>, vector<1x1x1x16xf32>
    %19 = vector.shape_cast %18 : vector<1x1x1x16xf32> to vector<1x1x16xf32>
    %20 = vector.broadcast %17 : vector<2x64x1xf32> to vector<2x64x16xf32>
    %21 = vector.broadcast %19 : vector<1x1x16xf32> to vector<2x64x16xf32>
    %22 = arith.mulf %20, %21 : vector<2x64x16xf32>
    %23 = arith.addf %16, %22 : vector<2x64x16xf32>
    %c0_32 = arith.constant 0 : index
    %c2 = arith.constant 2 : index
    %c0_33 = arith.constant 0 : index
    %24 = tpu.strided_load %arg16[%c0_32, %c2, %c0_33] {strides = array<i32: 1, 2, 1>} : memref<2x130x1xf32, #tpu.memory_space<vmem>>, vector<2x64x1xf32>
    %c2_34 = arith.constant 2 : index
    %c0_35 = arith.constant 0 : index
    %c0_36 = arith.constant 0 : index
    %c0_37 = arith.constant 0 : index
    %25 = vector.load %arg1[%c2_34, %c0_35, %c0_36, %c0_37] : memref<3x1x1x16xf32, #tpu.memory_space<vmem>>, vector<1x1x1x16xf32>
    %26 = vector.shape_cast %25 : vector<1x1x1x16xf32> to vector<1x1x16xf32>
    %27 = vector.broadcast %24 : vector<2x64x1xf32> to vector<2x64x16xf32>
    %28 = vector.broadcast %26 : vector<1x1x16xf32> to vector<2x64x16xf32>
    %29 = arith.mulf %27, %28 : vector<2x64x16xf32>
    %30 = arith.addf %23, %29 : vector<2x64x16xf32>
    %cst_38 = arith.constant 0.000000e+00 : f32
    %31 = vector.broadcast %cst_38 : f32 to vector<2x64x16xf32>
    %32 = arith.cmpf ogt, %30, %31 : vector<2x64x16xf32>
    %cst_39 = arith.constant 2.000000e-01 : f32
    %33 = vector.broadcast %cst_39 : f32 to vector<2x64x16xf32>
    %34 = arith.mulf %33, %30 : vector<2x64x16xf32>
    %35 = arith.select %32, %30, %34 : vector<2x64x16xi1>, vector<2x64x16xf32>
    %c0_40 = arith.constant 0 : index
    %c1_41 = arith.constant 1 : index
    %c0_42 = arith.constant 0 : index
    %36 = vector.load %arg17[%c0_40, %c1_41, %c0_42] : memref<2x66x16xf32, #tpu.memory_space<vmem>>, vector<2x64x16xf32>
    tpu.vector_store %arg17[%c0_40, %c1_41, %c0_42], %35 {strides = array<i32>} : memref<2x66x16xf32, #tpu.memory_space<vmem>>, vector<2x64x16xf32>,
    %c0_43 = arith.constant 0 : index
    %c0_44 = arith.constant 0 : index
    %37 = vector.load %arg4[%c0_43, %c0_44] : memref<1x32xf32, #tpu.memory_space<vmem>>, vector<1x32xf32>
    %c0_45 = arith.constant 0 : index
    %c0_46 = arith.constant 0 : index
    %c0_47 = arith.constant 0 : index
    %38 = tpu.strided_load %arg17[%c0_45, %c0_46, %c0_47] {strides = array<i32: 1, 2, 1>} : memref<2x66x16xf32, #tpu.memory_space<vmem>>, vector<2x32x16xf32>
    %39 = vector.shape_cast %38 : vector<2x32x16xf32> to vector<64x16xf32>
    %40 = arith.truncf %39 : vector<64x16xf32> to vector<64x16xbf16>
    %c0_48 = arith.constant 0 : index
    %c0_49 = arith.constant 0 : index
    %c0_50 = arith.constant 0 : index
    %41 = vector.load %arg3[%c0_48, %c0_49, %c0_50] : memref<3x16x32xbf16, #tpu.memory_space<vmem>>, vector<1x16x32xbf16>
    %42 = vector.shape_cast %41 : vector<1x16x32xbf16> to vector<16x32xbf16>
    %cst_51 = arith.constant dense<0.000000e+00> : vector<64x32xf32>
    %43 = tpu.matmul %40, %42, %cst_51 {dimension_numbers = #tpu.dot_dimension_numbers<[1], [0], [0], [1], [0, 0, 1, 1], [], []>} : vector<64x16xbf16>, vector<16x32xbf16>, vector<64x32xf32> -> vector<64x32xf32>
    %44 = vector.broadcast %37 : vector<1x32xf32> to vector<64x32xf32>
    %45 = arith.addf %44, %43 : vector<64x32xf32>
    %c0_52 = arith.constant 0 : index
    %c1_53 = arith.constant 1 : index
    %c0_54 = arith.constant 0 : index
    %46 = tpu.strided_load %arg17[%c0_52, %c1_53, %c0_54] {strides = array<i32: 1, 2, 1>} : memref<2x66x16xf32, #tpu.memory_space<vmem>>, vector<2x32x16xf32>
    %47 = vector.shape_cast %46 : vector<2x32x16xf32> to vector<64x16xf32>
    %48 = arith.truncf %47 : vector<64x16xf32> to vector<64x16xbf16>
    %c1_55 = arith.constant 1 : index
    %c0_56 = arith.constant 0 : index
    %c0_57 = arith.constant 0 : index
    %49 = vector.load %arg3[%c1_55, %c0_56, %c0_57] : memref<3x16x32xbf16, #tpu.memory_space<vmem>>, vector<1x16x32xbf16>
    %50 = vector.shape_cast %49 : vector<1x16x32xbf16> to vector<16x32xbf16>
    %cst_58 = arith.constant dense<0.000000e+00> : vector<64x32xf32>
    %51 = tpu.matmul %48, %50, %cst_58 {dimension_numbers = #tpu.dot_dimension_numbers<[1], [0], [0], [1], [0, 0, 1, 1], [], []>} : vector<64x16xbf16>, vector<16x32xbf16>, vector<64x32xf32> -> vector<64x32xf32>
    %52 = arith.addf %45, %51 : vector<64x32xf32>
    %c0_59 = arith.constant 0 : index
    %c2_60 = arith.constant 2 : index
    %c0_61 = arith.constant 0 : index
    %53 = tpu.strided_load %arg17[%c0_59, %c2_60, %c0_61] {strides = array<i32: 1, 2, 1>} : memref<2x66x16xf32, #tpu.memory_space<vmem>>, vector<2x32x16xf32>
    %54 = vector.shape_cast %53 : vector<2x32x16xf32> to vector<64x16xf32>
    %55 = arith.truncf %54 : vector<64x16xf32> to vector<64x16xbf16>
    %c2_62 = arith.constant 2 : index
    %c0_63 = arith.constant 0 : index
    %c0_64 = arith.constant 0 : index
    %56 = vector.load %arg3[%c2_62, %c0_63, %c0_64] : memref<3x16x32xbf16, #tpu.memory_space<vmem>>, vector<1x16x32xbf16>
    %57 = vector.shape_cast %56 : vector<1x16x32xbf16> to vector<16x32xbf16>
    %cst_65 = arith.constant dense<0.000000e+00> : vector<64x32xf32>
    %58 = tpu.matmul %55, %57, %cst_65 {dimension_numbers = #tpu.dot_dimension_numbers<[1], [0], [0], [1], [0, 0, 1, 1], [], []>} : vector<64x16xbf16>, vector<16x32xbf16>, vector<64x32xf32> -> vector<64x32xf32>
    %59 = arith.addf %52, %58 : vector<64x32xf32>
    %cst_66 = arith.constant dense<0.000000e+00> : vector<32xf32>
    %60 = vector.multi_reduction <add>, %59, %cst_66 [0] : vector<64x32xf32> to vector<32xf32>
    %61 = vector.shape_cast %60 : vector<32xf32> to vector<1x32xf32>
    %62 = arith.mulf %59, %59 : vector<64x32xf32>
    %cst_67 = arith.constant dense<0.000000e+00> : vector<32xf32>
    %63 = vector.multi_reduction <add>, %62, %cst_67 [0] : vector<64x32xf32> to vector<32xf32>
    %64 = vector.shape_cast %63 : vector<32xf32> to vector<1x32xf32>
    %cst_68 = arith.constant 1.562500e-02 : f32
    %65 = vector.broadcast %cst_68 : f32 to vector<1x32xf32>
    %66 = arith.mulf %61, %65 : vector<1x32xf32>
    %cst_69 = arith.constant 1.562500e-02 : f32
    %67 = vector.broadcast %cst_69 : f32 to vector<1x32xf32>
    %68 = arith.mulf %64, %67 : vector<1x32xf32>
    %69 = arith.mulf %66, %66 : vector<1x32xf32>
    %70 = arith.subf %68, %69 : vector<1x32xf32>
    %cst_70 = arith.constant 9.99999974E-6 : f32
    %71 = vector.broadcast %cst_70 : f32 to vector<1x32xf32>
    %72 = arith.addf %70, %71 : vector<1x32xf32>
    %73 = math.rsqrt %72 : vector<1x32xf32>
    %c0_71 = arith.constant 0 : index
    %c0_72 = arith.constant 0 : index
    %74 = vector.load %arg5[%c0_71, %c0_72] : memref<1x32xf32, #tpu.memory_space<vmem>>, vector<1x32xf32>
    %75 = arith.mulf %73, %74 : vector<1x32xf32>
    %c0_73 = arith.constant 0 : index
    %c0_74 = arith.constant 0 : index
    %76 = vector.load %arg6[%c0_73, %c0_74] : memref<1x32xf32, #tpu.memory_space<vmem>>, vector<1x32xf32>
    %77 = arith.mulf %66, %75 : vector<1x32xf32>
    %78 = arith.subf %76, %77 : vector<1x32xf32>
    %79 = vector.broadcast %75 : vector<1x32xf32> to vector<64x32xf32>
    %80 = arith.mulf %59, %79 : vector<64x32xf32>
    %81 = vector.broadcast %78 : vector<1x32xf32> to vector<64x32xf32>
    %82 = arith.addf %80, %81 : vector<64x32xf32>
    %cst_75 = arith.constant 0.000000e+00 : f32
    %83 = vector.broadcast %cst_75 : f32 to vector<64x32xf32>
    %84 = arith.cmpf ogt, %82, %83 : vector<64x32xf32>
    %cst_76 = arith.constant 2.000000e-01 : f32
    %85 = vector.broadcast %cst_76 : f32 to vector<64x32xf32>
    %86 = arith.mulf %85, %82 : vector<64x32xf32>
    %87 = arith.select %84, %82, %86 : vector<64x32xi1>, vector<64x32xf32>
    %88 = vector.shape_cast %87 : vector<64x32xf32> to vector<2x32x32xf32>
    %c0_77 = arith.constant 0 : index
    %c1_78 = arith.constant 1 : index
    %c0_79 = arith.constant 0 : index
    %89 = vector.load %arg18[%c0_77, %c1_78, %c0_79] : memref<2x34x32xf32, #tpu.memory_space<vmem>>, vector<2x32x32xf32>
    tpu.vector_store %arg18[%c0_77, %c1_78, %c0_79], %88 {strides = array<i32>} : memref<2x34x32xf32, #tpu.memory_space<vmem>>, vector<2x32x32xf32>,
    %c0_80 = arith.constant 0 : index
    %c0_81 = arith.constant 0 : index
    %90 = vector.load %arg8[%c0_80, %c0_81] : memref<1x64xf32, #tpu.memory_space<vmem>>, vector<1x64xf32>
    %c0_82 = arith.constant 0 : index
    %c0_83 = arith.constant 0 : index
    %c0_84 = arith.constant 0 : index
    %91 = tpu.strided_load %arg18[%c0_82, %c0_83, %c0_84] {strides = array<i32: 1, 2, 1>} : memref<2x34x32xf32, #tpu.memory_space<vmem>>, vector<2x16x32xf32>
    %92 = vector.shape_cast %91 : vector<2x16x32xf32> to vector<32x32xf32>
    %93 = arith.truncf %92 : vector<32x32xf32> to vector<32x32xbf16>
    %c0_85 = arith.constant 0 : index
    %c0_86 = arith.constant 0 : index
    %c0_87 = arith.constant 0 : index
    %94 = vector.load %arg7[%c0_85, %c0_86, %c0_87] : memref<3x32x64xbf16, #tpu.memory_space<vmem>>, vector<1x32x64xbf16>
    %95 = vector.shape_cast %94 : vector<1x32x64xbf16> to vector<32x64xbf16>
    %cst_88 = arith.constant dense<0.000000e+00> : vector<32x64xf32>
    %96 = tpu.matmul %93, %95, %cst_88 {dimension_numbers = #tpu.dot_dimension_numbers<[1], [0], [0], [1], [0, 0, 1, 1], [], []>} : vector<32x32xbf16>, vector<32x64xbf16>, vector<32x64xf32> -> vector<32x64xf32>
    %97 = vector.broadcast %90 : vector<1x64xf32> to vector<32x64xf32>
    %98 = arith.addf %97, %96 : vector<32x64xf32>
    %c0_89 = arith.constant 0 : index
    %c1_90 = arith.constant 1 : index
    %c0_91 = arith.constant 0 : index
    %99 = tpu.strided_load %arg18[%c0_89, %c1_90, %c0_91] {strides = array<i32: 1, 2, 1>} : memref<2x34x32xf32, #tpu.memory_space<vmem>>, vector<2x16x32xf32>
    %100 = vector.shape_cast %99 : vector<2x16x32xf32> to vector<32x32xf32>
    %101 = arith.truncf %100 : vector<32x32xf32> to vector<32x32xbf16>
    %c1_92 = arith.constant 1 : index
    %c0_93 = arith.constant 0 : index
    %c0_94 = arith.constant 0 : index
    %102 = vector.load %arg7[%c1_92, %c0_93, %c0_94] : memref<3x32x64xbf16, #tpu.memory_space<vmem>>, vector<1x32x64xbf16>
    %103 = vector.shape_cast %102 : vector<1x32x64xbf16> to vector<32x64xbf16>
    %cst_95 = arith.constant dense<0.000000e+00> : vector<32x64xf32>
    %104 = tpu.matmul %101, %103, %cst_95 {dimension_numbers = #tpu.dot_dimension_numbers<[1], [0], [0], [1], [0, 0, 1, 1], [], []>} : vector<32x32xbf16>, vector<32x64xbf16>, vector<32x64xf32> -> vector<32x64xf32>
    %105 = arith.addf %98, %104 : vector<32x64xf32>
    %c0_96 = arith.constant 0 : index
    %c2_97 = arith.constant 2 : index
    %c0_98 = arith.constant 0 : index
    %106 = tpu.strided_load %arg18[%c0_96, %c2_97, %c0_98] {strides = array<i32: 1, 2, 1>} : memref<2x34x32xf32, #tpu.memory_space<vmem>>, vector<2x16x32xf32>
    %107 = vector.shape_cast %106 : vector<2x16x32xf32> to vector<32x32xf32>
    %108 = arith.truncf %107 : vector<32x32xf32> to vector<32x32xbf16>
    %c2_99 = arith.constant 2 : index
    %c0_100 = arith.constant 0 : index
    %c0_101 = arith.constant 0 : index
    %109 = vector.load %arg7[%c2_99, %c0_100, %c0_101] : memref<3x32x64xbf16, #tpu.memory_space<vmem>>, vector<1x32x64xbf16>
    %110 = vector.shape_cast %109 : vector<1x32x64xbf16> to vector<32x64xbf16>
    %cst_102 = arith.constant dense<0.000000e+00> : vector<32x64xf32>
    %111 = tpu.matmul %108, %110, %cst_102 {dimension_numbers = #tpu.dot_dimension_numbers<[1], [0], [0], [1], [0, 0, 1, 1], [], []>} : vector<32x32xbf16>, vector<32x64xbf16>, vector<32x64xf32> -> vector<32x64xf32>
    %112 = arith.addf %105, %111 : vector<32x64xf32>
    %cst_103 = arith.constant dense<0.000000e+00> : vector<64xf32>
    %113 = vector.multi_reduction <add>, %112, %cst_103 [0] : vector<32x64xf32> to vector<64xf32>
    %114 = vector.shape_cast %113 : vector<64xf32> to vector<1x64xf32>
    %115 = arith.mulf %112, %112 : vector<32x64xf32>
    %cst_104 = arith.constant dense<0.000000e+00> : vector<64xf32>
    %116 = vector.multi_reduction <add>, %115, %cst_104 [0] : vector<32x64xf32> to vector<64xf32>
    %117 = vector.shape_cast %116 : vector<64xf32> to vector<1x64xf32>
    %cst_105 = arith.constant 3.125000e-02 : f32
    %118 = vector.broadcast %cst_105 : f32 to vector<1x64xf32>
    %119 = arith.mulf %114, %118 : vector<1x64xf32>
    %cst_106 = arith.constant 3.125000e-02 : f32
    %120 = vector.broadcast %cst_106 : f32 to vector<1x64xf32>
    %121 = arith.mulf %117, %120 : vector<1x64xf32>
    %122 = arith.mulf %119, %119 : vector<1x64xf32>
    %123 = arith.subf %121, %122 : vector<1x64xf32>
    %cst_107 = arith.constant 9.99999974E-6 : f32
    %124 = vector.broadcast %cst_107 : f32 to vector<1x64xf32>
    %125 = arith.addf %123, %124 : vector<1x64xf32>
    %126 = math.rsqrt %125 : vector<1x64xf32>
    %c0_108 = arith.constant 0 : index
    %c0_109 = arith.constant 0 : index
    %127 = vector.load %arg9[%c0_108, %c0_109] : memref<1x64xf32, #tpu.memory_space<vmem>>, vector<1x64xf32>
    %128 = arith.mulf %126, %127 : vector<1x64xf32>
    %c0_110 = arith.constant 0 : index
    %c0_111 = arith.constant 0 : index
    %129 = vector.load %arg10[%c0_110, %c0_111] : memref<1x64xf32, #tpu.memory_space<vmem>>, vector<1x64xf32>
    %130 = arith.mulf %119, %128 : vector<1x64xf32>
    %131 = arith.subf %129, %130 : vector<1x64xf32>
    %132 = vector.broadcast %128 : vector<1x64xf32> to vector<32x64xf32>
    %133 = arith.mulf %112, %132 : vector<32x64xf32>
    %134 = vector.broadcast %131 : vector<1x64xf32> to vector<32x64xf32>
    %135 = arith.addf %133, %134 : vector<32x64xf32>
    %cst_112 = arith.constant 0.000000e+00 : f32
    %136 = vector.broadcast %cst_112 : f32 to vector<32x64xf32>
    %137 = arith.cmpf ogt, %135, %136 : vector<32x64xf32>
    %cst_113 = arith.constant 2.000000e-01 : f32
    %138 = vector.broadcast %cst_113 : f32 to vector<32x64xf32>
    %139 = arith.mulf %138, %135 : vector<32x64xf32>
    %140 = arith.select %137, %135, %139 : vector<32x64xi1>, vector<32x64xf32>
    %141 = vector.shape_cast %140 : vector<32x64xf32> to vector<2x16x64xf32>
    %c0_114 = arith.constant 0 : index
    %c0_115 = arith.constant 0 : index
    %c0_116 = arith.constant 0 : index
    %142 = vector.load %arg19[%c0_114, %c0_115, %c0_116] : memref<2x16x64xf32, #tpu.memory_space<vmem>>, vector<2x16x64xf32>
    tpu.vector_store %arg19[%c0_114, %c0_115, %c0_116], %141 {strides = array<i32>} : memref<2x16x64xf32, #tpu.memory_space<vmem>>, vector<2x16x64xf32>,
    %c0_117 = arith.constant 0 : index
    %c0_118 = arith.constant 0 : index
    %143 = vector.load %arg12[%c0_117, %c0_118] : memref<1x1xf32, #tpu.memory_space<vmem>>, vector<1x1xf32>
    %c0_119 = arith.constant 0 : index
    %c0_120 = arith.constant 0 : index
    %c0_121 = arith.constant 0 : index
    %144 = tpu.strided_load %arg19[%c0_119, %c0_120, %c0_121] {strides = array<i32: 1, 2, 1>} : memref<2x16x64xf32, #tpu.memory_space<vmem>>, vector<2x7x64xf32>
    %c0_122 = arith.constant 0 : index
    %c0_123 = arith.constant 0 : index
    %c0_124 = arith.constant 0 : index
    %c0_125 = arith.constant 0 : index
    %145 = vector.load %arg11[%c0_122, %c0_123, %c0_124, %c0_125] : memref<3x1x1x64xf32, #tpu.memory_space<vmem>>, vector<1x1x1x64xf32>
    %146 = vector.shape_cast %145 : vector<1x1x1x64xf32> to vector<1x1x64xf32>
    %147 = vector.broadcast %146 : vector<1x1x64xf32> to vector<2x7x64xf32>
    %148 = arith.mulf %144, %147 : vector<2x7x64xf32>
    %cst_126 = arith.constant dense<0.000000e+00> : vector<2x7xf32>
    %149 = vector.multi_reduction <add>, %148, %cst_126 [2] : vector<2x7x64xf32> to vector<2x7xf32>
    %150 = vector.broadcast %143 : vector<1x1xf32> to vector<2x7xf32>
    %151 = arith.addf %150, %149 : vector<2x7xf32>
    %c0_127 = arith.constant 0 : index
    %c1_128 = arith.constant 1 : index
    %c0_129 = arith.constant 0 : index
    %152 = tpu.strided_load %arg19[%c0_127, %c1_128, %c0_129] {strides = array<i32: 1, 2, 1>} : memref<2x16x64xf32, #tpu.memory_space<vmem>>, vector<2x7x64xf32>
    %c1_130 = arith.constant 1 : index
    %c0_131 = arith.constant 0 : index
    %c0_132 = arith.constant 0 : index
    %c0_133 = arith.constant 0 : index
    %153 = vector.load %arg11[%c1_130, %c0_131, %c0_132, %c0_133] : memref<3x1x1x64xf32, #tpu.memory_space<vmem>>, vector<1x1x1x64xf32>
    %154 = vector.shape_cast %153 : vector<1x1x1x64xf32> to vector<1x1x64xf32>
    %155 = vector.broadcast %154 : vector<1x1x64xf32> to vector<2x7x64xf32>
    %156 = arith.mulf %152, %155 : vector<2x7x64xf32>
    %cst_134 = arith.constant dense<0.000000e+00> : vector<2x7xf32>
    %157 = vector.multi_reduction <add>, %156, %cst_134 [2] : vector<2x7x64xf32> to vector<2x7xf32>
    %158 = arith.addf %151, %157 : vector<2x7xf32>
    %c0_135 = arith.constant 0 : index
    %c2_136 = arith.constant 2 : index
    %c0_137 = arith.constant 0 : index
    %159 = tpu.strided_load %arg19[%c0_135, %c2_136, %c0_137] {strides = array<i32: 1, 2, 1>} : memref<2x16x64xf32, #tpu.memory_space<vmem>>, vector<2x7x64xf32>
    %c2_138 = arith.constant 2 : index
    %c0_139 = arith.constant 0 : index
    %c0_140 = arith.constant 0 : index
    %c0_141 = arith.constant 0 : index
    %160 = vector.load %arg11[%c2_138, %c0_139, %c0_140, %c0_141] : memref<3x1x1x64xf32, #tpu.memory_space<vmem>>, vector<1x1x1x64xf32>
    %161 = vector.shape_cast %160 : vector<1x1x1x64xf32> to vector<1x1x64xf32>
    %162 = vector.broadcast %161 : vector<1x1x64xf32> to vector<2x7x64xf32>
    %163 = arith.mulf %159, %162 : vector<2x7x64xf32>
    %cst_142 = arith.constant dense<0.000000e+00> : vector<2x7xf32>
    %164 = vector.multi_reduction <add>, %163, %cst_142 [2] : vector<2x7x64xf32> to vector<2x7xf32>
    %165 = arith.addf %158, %164 : vector<2x7xf32>
    %cst_143 = arith.constant dense<0.000000e+00> : vector<2xf32>
    %166 = vector.multi_reduction <add>, %165, %cst_143 [1] : vector<2x7xf32> to vector<2xf32>
    %167 = vector.shape_cast %166 : vector<2xf32> to vector<2x1xf32>
    %cst_144 = arith.constant 0.142857149 : f32
    %168 = vector.broadcast %cst_144 : f32 to vector<2x1xf32>
    %169 = arith.mulf %167, %168 : vector<2x1xf32>
    %c0_145 = arith.constant 0 : index
    %c0_146 = arith.constant 0 : index
    %170 = vector.load %arg13[%c0_145, %c0_146] : memref<1x1xf32, #tpu.memory_space<vmem>>, vector<1x1xf32>
    %171 = vector.broadcast %170 : vector<1x1xf32> to vector<2x1xf32>
    %172 = arith.mulf %169, %171 : vector<2x1xf32>
    %c0_147 = arith.constant 0 : index
    %c0_148 = arith.constant 0 : index
    %173 = vector.load %arg14[%c0_147, %c0_148] : memref<1x1xf32, #tpu.memory_space<vmem>>, vector<1x1xf32>
    %174 = vector.broadcast %173 : vector<1x1xf32> to vector<2x1xf32>
    %175 = arith.addf %172, %174 : vector<2x1xf32>
    %cst_149 = arith.constant 0.000000e+00 : f32
    %176 = vector.broadcast %cst_149 : f32 to vector<2x1xf32>
    %177 = arith.subf %176, %175 : vector<2x1xf32>
    %178 = math.exp %177 : vector<2x1xf32>
    %cst_150 = arith.constant 1.000000e+00 : f32
    %179 = vector.broadcast %cst_150 : f32 to vector<2x1xf32>
    %180 = arith.addf %179, %178 : vector<2x1xf32>
    %cst_151 = arith.constant 1.000000e+00 : f32
    %181 = vector.broadcast %cst_151 : f32 to vector<2x1xf32>
    %182 = arith.divf %181, %180 : vector<2x1xf32>
    %c0_152 = arith.constant 0 : index
    %c0_153 = arith.constant 0 : index
    %183 = vector.load %arg15[%c0_152, %c0_153] : memref<2x1xf32, #tpu.memory_space<vmem>>, vector<2x1xf32>
    tpu.vector_store %arg15[%c0_152, %c0_153], %182 {strides = array<i32>} : memref<2x1xf32, #tpu.memory_space<vmem>>, vector<2x1xf32>,
    return
  }
}

</mosaic_0001>

<llo_original>
// kernel: discriminator_forward.1
$region0: #{discriminator_forward.1}
  #allocation0 [shape = 'u32[]', space=smem, size = 0x4, offset = 0x4, fixed_abs, tag = 'smem constant byte address 0x4 - core index']
  #allocation1 [shape = 'u32[144,128]{1,0:T(1,128)}', space=vmem, size = 0x12000, scoped, tag = 'internal scratch']
  #allocation2 [shape = 'f32[2,130,1]{2,1,0:T(8,128)}', space=vmem, size = 0x22000, scoped, tag = 'scratch operand']
  #allocation3 [shape = 'f32[2,66,16]{2,1,0:T(8,128)}', space=vmem, size = 0x12000, scoped, tag = 'scratch operand']
  #allocation4 [shape = 'f32[2,34,32]{2,1,0:T(8,128)}', space=vmem, size = 0xa000, scoped, tag = 'scratch operand']
  #allocation5 [shape = 'f32[2,16,64]{2,1,0:T(8,128)}', space=vmem, size = 0x4000, scoped, tag = 'scratch operand']
  #allocation6 [shape = 'f32[1,1]{1,0:T(1,128)S(1)}', space=vmem, size = 0x200, scoped, tag = 'scoped memory for discriminator_forward.1']
  #allocation7 [shape = 'f32[1,1]{1,0:T(1,128)S(1)}', space=vmem, size = 0x200, scoped, tag = 'scoped memory for discriminator_forward.1']
  #allocation8 [shape = 'f32[1,1]{1,0:T(1,128)S(1)}', space=vmem, size = 0x200, scoped, tag = 'scoped memory for discriminator_forward.1']
  %s0 = inlined_call_operand.vmem [shape: f32[2,128,1], index: 0, kind: input, shape index: {}]
  %s1 = inlined_call_operand.vmem [shape: f32[3,1,1,16], index: 1, kind: input, shape index: {}]
  %s2 = inlined_call_operand.vmem [shape: f32[1,1,16], index: 2, kind: input, shape index: {}]
  %s3 = inlined_call_operand.vmem [shape: bf16[3,16,32], index: 3, kind: input, shape index: {}]
  %s4 = inlined_call_operand.vmem [shape: f32[1,32], index: 4, kind: input, shape index: {}]
  %s5 = inlined_call_operand.vmem [shape: f32[1,32], index: 5, kind: input, shape index: {}]
  %s6 = inlined_call_operand.vmem [shape: f32[1,32], index: 6, kind: input, shape index: {}]
  %s7 = inlined_call_operand.vmem [shape: bf16[3,32,64], index: 7, kind: input, shape index: {}]
  %s8 = inlined_call_operand.vmem [shape: f32[1,64], index: 8, kind: input, shape index: {}]
  %s9 = inlined_call_operand.vmem [shape: f32[1,64], index: 9, kind: input, shape index: {}]
  %s10 = inlined_call_operand.vmem [shape: f32[1,64], index: 10, kind: input, shape index: {}]
  %s11 = inlined_call_operand.vmem [shape: f32[3,1,1,64], index: 11, kind: input, shape index: {}]
  %s12 = inlined_call_operand.<no memory space> [shape: f32[1,1], index: 12, kind: input, shape index: {}]
  %s13 = inlined_call_operand.<no memory space> [shape: f32[1,1], index: 13, kind: input, shape index: {}]
  %s14 = inlined_call_operand.<no memory space> [shape: f32[1,1], index: 14, kind: input, shape index: {}]
  %s15 = inlined_call_operand.vmem [shape: f32[2,1], index: 15, kind: output, shape index: {}]
  %s16 = sld [smem:[#allocation0]]
  $region70: #{discriminator_forward.1} parent=0
    _
  %s18 = ssub.s32 1, %s16
  %s19 = scalar_select 0, %s18, %s16
  %v20 = vstv %s12
  %21 = vst [vmem:[#allocation6] sm:$0x1] %v20
  %v22 = vstv %s13
  %23 = vst [vmem:[#allocation7] sm:$0x1] %v22
  %v24 = vstv %s14
  %25 = vst [vmem:[#allocation8] sm:$0x1] %v24
  // Predicated region
  $region2: #{discriminator_forward.1} parent=0 // pred_check
    _
  $region3: #{discriminator_forward.1} parent=0 // pred_check_branch
    %27 = sbr.rel (0) target = $region5
  $region4: #{discriminator_forward.1} parent=0 // pred_region
    _
  $region5: #{discriminator_forward.1} parent=0 // pred_fallthru
    _
  // Predicated region
  $region6: #{discriminator_forward.1} parent=0 // pred_check
    _
  $region7: #{discriminator_forward.1} parent=0 // pred_check_branch
    %29 = sbr.rel (0) target = $region9
  $region8: #{discriminator_forward.1} parent=0 // pred_region
    _
  $region9: #{discriminator_forward.1} parent=0 // pred_fallthru
    _
  // Predicated region
  $region10: #{discriminator_forward.1} parent=0 // pred_check
    _
  $region11: #{discriminator_forward.1} parent=0 // pred_check_branch
    %31 = sbr.rel (0) target = $region13
  $region12: #{discriminator_forward.1} parent=0 // pred_region
    _
  $region13: #{discriminator_forward.1} parent=0 // pred_fallthru
    _
  // Predicated region
  $region14: #{discriminator_forward.1} parent=0 // pred_check
    _
  $region15: #{discriminator_forward.1} parent=0 // pred_check_branch
    %33 = sbr.rel (0) target = $region17
  $region16: #{discriminator_forward.1} parent=0 // pred_region
    _
  $region17: #{discriminator_forward.1} parent=0 // pred_fallthru
    _
  // Predicated region
  $region18: #{discriminator_forward.1} parent=0 // pred_check
    _
  $region19: #{discriminator_forward.1} parent=0 // pred_check_branch
    %35 = sbr.rel (0) target = $region21
  $region20: #{discriminator_forward.1} parent=0 // pred_region
    _
  $region21: #{discriminator_forward.1} parent=0 // pred_fallthru
    _
  // Predicated region
  $region22: #{discriminator_forward.1} parent=0 // pred_check
    _
  $region23: #{discriminator_forward.1} parent=0 // pred_check_branch
    %37 = sbr.rel (0) target = $region25
  $region24: #{discriminator_forward.1} parent=0 // pred_region
    _
  $region25: #{discriminator_forward.1} parent=0 // pred_fallthru
    _
  // Predicated region
  $region26: #{discriminator_forward.1} parent=0 // pred_check
    _
  $region27: #{discriminator_forward.1} parent=0 // pred_check_branch
    %39 = sbr.rel (0) target = $region29
  $region28: #{discriminator_forward.1} parent=0 // pred_region
    _
  $region29: #{discriminator_forward.1} parent=0 // pred_fallthru
    _
  // Predicated region
  $region30: #{discriminator_forward.1} parent=0 // pred_check
    _
  $region31: #{discriminator_forward.1} parent=0 // pred_check_branch
    %41 = sbr.rel (0) target = $region33
  $region32: #{discriminator_forward.1} parent=0 // pred_region
    _
  $region33: #{discriminator_forward.1} parent=0 // pred_fallthru
    _
  // Predicated region
  $region34: #{discriminator_forward.1} parent=0 // pred_check
    _
  $region35: #{discriminator_forward.1} parent=0 // pred_check_branch
    %43 = sbr.rel (0) target = $region37
  $region36: #{discriminator_forward.1} parent=0 // pred_region
    _
  $region37: #{discriminator_forward.1} parent=0 // pred_fallthru
    _
  // Predicated region
  $region38: #{discriminator_forward.1} parent=0 // pred_check
    _
  $region39: #{discriminator_forward.1} parent=0 // pred_check_branch
    %45 = sbr.rel (0) target = $region41
  $region40: #{discriminator_forward.1} parent=0 // pred_region
    _
  $region41: #{discriminator_forward.1} parent=0 // pred_fallthru
    _
  // Predicated region
  $region42: #{discriminator_forward.1} parent=0 // pred_check
    _
  $region43: #{discriminator_forward.1} parent=0 // pred_check_branch
    %47 = sbr.rel (0) target = $region45
  $region44: #{discriminator_forward.1} parent=0 // pred_region
    _
  $region45: #{discriminator_forward.1} parent=0 // pred_fallthru
    _
  // Predicated region
  $region46: #{discriminator_forward.1} parent=0 // pred_check
    _
  $region47: #{discriminator_forward.1} parent=0 // pred_check_branch
    %49 = sbr.rel (0) target = $region49
  $region48: #{discriminator_forward.1} parent=0 // pred_region
    _
  $region49: #{discriminator_forward.1} parent=0 // pred_fallthru
    _
  // Predicated region
  $region50: #{discriminator_forward.1} parent=0 // pred_check
    _
  $region51: #{discriminator_forward.1} parent=0 // pred_check_branch
    %51 = sbr.rel (0) target = $region53
  $region52: #{discriminator_forward.1} parent=0 // pred_region
    _
  $region53: #{discriminator_forward.1} parent=0 // pred_fallthru
    _
  // Predicated region
  $region54: #{discriminator_forward.1} parent=0 // pred_check
    _
  $region55: #{discriminator_forward.1} parent=0 // pred_check_branch
    %53 = sbr.rel (0) target = $region57
  $region56: #{discriminator_forward.1} parent=0 // pred_region
    _
  $region57: #{discriminator_forward.1} parent=0 // pred_fallthru
    _
  // Predicated region
  $region58: #{discriminator_forward.1} parent=0 // pred_check
    _
  $region59: #{discriminator_forward.1} parent=0 // pred_check_branch
    %55 = sbr.rel (0) target = $region61
  $region60: #{discriminator_forward.1} parent=0 // pred_region
    _
  $region61: #{discriminator_forward.1} parent=0 // pred_fallthru
    _
  %vm57 = vcmask 7168
  %58 = vst.msk [vmem:[#allocation2] sm:$0xff] %vm57, 0.0
  %59 = vst.msk [vmem:[#allocation2 + $0x8] sm:$0xff] %vm57, 0.0
  %60 = vst.msk [vmem:[#allocation2 + $0x10] sm:$0xff] %vm57, 0.0
  %61 = vst.msk [vmem:[#allocation2 + $0x18] sm:$0xff] %vm57, 0.0
  %62 = vst.msk [vmem:[#allocation2 + $0x20] sm:$0xff] %vm57, 0.0
  %63 = vst.msk [vmem:[#allocation2 + $0x28] sm:$0xff] %vm57, 0.0
  %64 = vst.msk [vmem:[#allocation2 + $0x30] sm:$0xff] %vm57, 0.0
  %65 = vst.msk [vmem:[#allocation2 + $0x38] sm:$0xff] %vm57, 0.0
  %66 = vst.msk [vmem:[#allocation2 + $0x40] sm:$0xff] %vm57, 0.0
  %67 = vst.msk [vmem:[#allocation2 + $0x48] sm:$0xff] %vm57, 0.0
  %68 = vst.msk [vmem:[#allocation2 + $0x50] sm:$0xff] %vm57, 0.0
  %69 = vst.msk [vmem:[#allocation2 + $0x58] sm:$0xff] %vm57, 0.0
  %70 = vst.msk [vmem:[#allocation2 + $0x60] sm:$0xff] %vm57, 0.0
  %71 = vst.msk [vmem:[#allocation2 + $0x68] sm:$0xff] %vm57, 0.0
  %72 = vst.msk [vmem:[#allocation2 + $0x70] sm:$0xff] %vm57, 0.0
  %73 = vst.msk [vmem:[#allocation2 + $0x78] sm:$0xff] %vm57, 0.0
  %vm74 = vcmask 1024
  %75 = vst.msk [vmem:[#allocation2 + $0x80] sm:$0x3] %vm74, 0.0
  %76 = vst.msk [vmem:[#allocation2 + $0x88] sm:$0xff] %vm57, 0.0
  %77 = vst.msk [vmem:[#allocation2 + $0x90] sm:$0xff] %vm57, 0.0
  %78 = vst.msk [vmem:[#allocation2 + $0x98] sm:$0xff] %vm57, 0.0
  %79 = vst.msk [vmem:[#allocation2 + $0xa0] sm:$0xff] %vm57, 0.0
  %80 = vst.msk [vmem:[#allocation2 + $0xa8] sm:$0xff] %vm57, 0.0
  %81 = vst.msk [vmem:[#allocation2 + $0xb0] sm:$0xff] %vm57, 0.0
  %82 = vst.msk [vmem:[#allocation2 + $0xb8] sm:$0xff] %vm57, 0.0
  %83 = vst.msk [vmem:[#allocation2 + $0xc0] sm:$0xff] %vm57, 0.0
  %84 = vst.msk [vmem:[#allocation2 + $0xc8] sm:$0xff] %vm57, 0.0
  %85 = vst.msk [vmem:[#allocation2 + $0xd0] sm:$0xff] %vm57, 0.0
  %86 = vst.msk [vmem:[#allocation2 + $0xd8] sm:$0xff] %vm57, 0.0
  %87 = vst.msk [vmem:[#allocation2 + $0xe0] sm:$0xff] %vm57, 0.0
  %88 = vst.msk [vmem:[#allocation2 + $0xe8] sm:$0xff] %vm57, 0.0
  %89 = vst.msk [vmem:[#allocation2 + $0xf0] sm:$0xff] %vm57, 0.0
  %90 = vst.msk [vmem:[#allocation2 + $0xf8] sm:$0xff] %vm57, 0.0
  %91 = vst.msk [vmem:[#allocation2 + $0x100] sm:$0xff] %vm57, 0.0
  %92 = vst.msk [vmem:[#allocation2 + $0x108] sm:$0x3] %vm74, 0.0
  %vm93 = vcmask 130048
  %94 = vst.msk [vmem:[#allocation3] sm:$0xff] %vm93, 0.0
  %95 = vst.msk [vmem:[#allocation3 + $0x8] sm:$0xff] %vm93, 0.0
  %96 = vst.msk [vmem:[#allocation3 + $0x10] sm:$0xff] %vm93, 0.0
  %97 = vst.msk [vmem:[#allocation3 + $0x18] sm:$0xff] %vm93, 0.0
  %98 = vst.msk [vmem:[#allocation3 + $0x20] sm:$0xff] %vm93, 0.0
  %99 = vst.msk [vmem:[#allocation3 + $0x28] sm:$0xff] %vm93, 0.0
  %100 = vst.msk [vmem:[#allocation3 + $0x30] sm:$0xff] %vm93, 0.0
  %101 = vst.msk [vmem:[#allocation3 + $0x38] sm:$0xff] %vm93, 0.0
  %vm102 = vcmask 123904
  %103 = vst.msk [vmem:[#allocation3 + $0x40] sm:$0x3] %vm102, 0.0
  %104 = vst.msk [vmem:[#allocation3 + $0x48] sm:$0xff] %vm93, 0.0
  %105 = vst.msk [vmem:[#allocation3 + $0x50] sm:$0xff] %vm93, 0.0
  %106 = vst.msk [vmem:[#allocation3 + $0x58] sm:$0xff] %vm93, 0.0
  %107 = vst.msk [vmem:[#allocation3 + $0x60] sm:$0xff] %vm93, 0.0
  %108 = vst.msk [vmem:[#allocation3 + $0x68] sm:$0xff] %vm93, 0.0
  %109 = vst.msk [vmem:[#allocation3 + $0x70] sm:$0xff] %vm93, 0.0
  %110 = vst.msk [vmem:[#allocation3 + $0x78] sm:$0xff] %vm93, 0.0
  %111 = vst.msk [vmem:[#allocation3 + $0x80] sm:$0xff] %vm93, 0.0
  %112 = vst.msk [vmem:[#allocation3 + $0x88] sm:$0x3] %vm102, 0.0
  %vm113 = vcmask 261120
  %114 = vst.msk [vmem:[#allocation4] sm:$0xff] %vm113, 0.0
  %115 = vst.msk [vmem:[#allocation4 + $0x8] sm:$0xff] %vm113, 0.0
  %116 = vst.msk [vmem:[#allocation4 + $0x10] sm:$0xff] %vm113, 0.0
  %117 = vst.msk [vmem:[#allocation4 + $0x18] sm:$0xff] %vm113, 0.0
  %vm118 = vcmask 254976
  %119 = vst.msk [vmem:[#allocation4 + $0x20] sm:$0x3] %vm118, 0.0
  %120 = vst.msk [vmem:[#allocation4 + $0x28] sm:$0xff] %vm113, 0.0
  %121 = vst.msk [vmem:[#allocation4 + $0x30] sm:$0xff] %vm113, 0.0
  %122 = vst.msk [vmem:[#allocation4 + $0x38] sm:$0xff] %vm113, 0.0
  %123 = vst.msk [vmem:[#allocation4 + $0x40] sm:$0xff] %vm113, 0.0
  %124 = vst.msk [vmem:[#allocation4 + $0x48] sm:$0x3] %vm118, 0.0
  %v125 = vld [vmem:[%s0] sm:$0xff]
  %v126 = vld [vmem:[%s0 + $0x8] sm:$0xff]
  %v127 = vld [vmem:[%s0 + $0x10] sm:$0xff]
  %v128 = vld [vmem:[%s0 + $0x18] sm:$0xff]
  %v129 = vld [vmem:[%s0 + $0x20] sm:$0xff]
  %v130 = vld [vmem:[%s0 + $0x28] sm:$0xff]
  %v131 = vld [vmem:[%s0 + $0x30] sm:$0xff]
  %v132 = vld [vmem:[%s0 + $0x38] sm:$0xff]
  %v133 = vld [vmem:[%s0 + $0x40] sm:$0xff]
  %v134 = vld [vmem:[%s0 + $0x48] sm:$0xff]
  %v135 = vld [vmem:[%s0 + $0x50] sm:$0xff]
  %v136 = vld [vmem:[%s0 + $0x58] sm:$0xff]
  %v137 = vld [vmem:[%s0 + $0x60] sm:$0xff]
  %v138 = vld [vmem:[%s0 + $0x68] sm:$0xff]
  %v139 = vld [vmem:[%s0 + $0x70] sm:$0xff]
  %v140 = vld [vmem:[%s0 + $0x78] sm:$0xff]
  %v141 = vld [vmem:[%s0 + $0x80] sm:$0xff]
  %v142 = vld [vmem:[%s0 + $0x88] sm:$0xff]
  %v143 = vld [vmem:[%s0 + $0x90] sm:$0xff]
  %v144 = vld [vmem:[%s0 + $0x98] sm:$0xff]
  %v145 = vld [vmem:[%s0 + $0xa0] sm:$0xff]
  %v146 = vld [vmem:[%s0 + $0xa8] sm:$0xff]
  %v147 = vld [vmem:[%s0 + $0xb0] sm:$0xff]
  %v148 = vld [vmem:[%s0 + $0xb8] sm:$0xff]
  %v149 = vld [vmem:[%s0 + $0xc0] sm:$0xff]
  %v150 = vld [vmem:[%s0 + $0xc8] sm:$0xff]
  %v151 = vld [vmem:[%s0 + $0xd0] sm:$0xff]
  %v152 = vld [vmem:[%s0 + $0xd8] sm:$0xff]
  %v153 = vld [vmem:[%s0 + $0xe0] sm:$0xff]
  %v154 = vld [vmem:[%s0 + $0xe8] sm:$0xff]
  %v155 = vld [vmem:[%s0 + $0xf0] sm:$0xff]
  %v156 = vld [vmem:[%s0 + $0xf8] sm:$0xff]
  %157 = vst.msk [vmem:[#allocation2 + $0x1] sm:$0xff] %vm57, %v125
  %158 = vst.msk [vmem:[#allocation2 + $0x9] sm:$0xff] %vm57, %v126
  %159 = vst.msk [vmem:[#allocation2 + $0x11] sm:$0xff] %vm57, %v127
  %160 = vst.msk [vmem:[#allocation2 + $0x19] sm:$0xff] %vm57, %v128
  %161 = vst.msk [vmem:[#allocation2 + $0x21] sm:$0xff] %vm57, %v129
  %162 = vst.msk [vmem:[#allocation2 + $0x29] sm:$0xff] %vm57, %v130
  %163 = vst.msk [vmem:[#allocation2 + $0x31] sm:$0xff] %vm57, %v131
  %164 = vst.msk [vmem:[#allocation2 + $0x39] sm:$0xff] %vm57, %v132
  %165 = vst.msk [vmem:[#allocation2 + $0x41] sm:$0xff] %vm57, %v133
  %166 = vst.msk [vmem:[#allocation2 + $0x49] sm:$0xff] %vm57, %v134
  %167 = vst.msk [vmem:[#allocation2 + $0x51] sm:$0xff] %vm57, %v135
  %168 = vst.msk [vmem:[#allocation2 + $0x59] sm:$0xff] %vm57, %v136
  %169 = vst.msk [vmem:[#allocation2 + $0x61] sm:$0xff] %vm57, %v137
  %170 = vst.msk [vmem:[#allocation2 + $0x69] sm:$0xff] %vm57, %v138
  %171 = vst.msk [vmem:[#allocation2 + $0x71] sm:$0xff] %vm57, %v139
  %172 = vst.msk [vmem:[#allocation2 + $0x79] sm:$0xff] %vm57, %v140
  %173 = vst.msk [vmem:[#allocation2 + $0x89] sm:$0xff] %vm57, %v141
  %174 = vst.msk [vmem:[#allocation2 + $0x91] sm:$0xff] %vm57, %v142
  %175 = vst.msk [vmem:[#allocation2 + $0x99] sm:$0xff] %vm57, %v143
  %176 = vst.msk [vmem:[#allocation2 + $0xa1] sm:$0xff] %vm57, %v144
  %177 = vst.msk [vmem:[#allocation2 + $0xa9] sm:$0xff] %vm57, %v145
  %178 = vst.msk [vmem:[#allocation2 + $0xb1] sm:$0xff] %vm57, %v146
  %179 = vst.msk [vmem:[#allocation2 + $0xb9] sm:$0xff] %vm57, %v147
  %180 = vst.msk [vmem:[#allocation2 + $0xc1] sm:$0xff] %vm57, %v148
  %181 = vst.msk [vmem:[#allocation2 + $0xc9] sm:$0xff] %vm57, %v149
  %182 = vst.msk [vmem:[#allocation2 + $0xd1] sm:$0xff] %vm57, %v150
  %183 = vst.msk [vmem:[#allocation2 + $0xd9] sm:$0xff] %vm57, %v151
  %184 = vst.msk [vmem:[#allocation2 + $0xe1] sm:$0xff] %vm57, %v152
  %185 = vst.msk [vmem:[#allocation2 + $0xe9] sm:$0xff] %vm57, %v153
  %186 = vst.msk [vmem:[#allocation2 + $0xf1] sm:$0xff] %vm57, %v154
  %187 = vst.msk [vmem:[#allocation2 + $0xf9] sm:$0xff] %vm57, %v155
  %188 = vst.msk [vmem:[#allocation2 + $0x101] sm:$0xff] %vm57, %v156
  %v189 = vld [vmem:[%s2] sm:$0x1]
  %v190 = vld [vmem:[#allocation2] ss:$2 sm:$0xff]
  %s191 = scalar_lea.vmem [#allocation2], 16
  %v192 = vld [vmem:[%s191] ss:$2 sm:$0xff]
  %s193 = scalar_lea.vmem [#allocation2], 32
  %v194 = vld [vmem:[%s193] ss:$2 sm:$0xff]
  %s195 = scalar_lea.vmem [#allocation2], 48
  %v196 = vld [vmem:[%s195] ss:$2 sm:$0xff]
  %s197 = scalar_lea.vmem [#allocation2], 64
  %v198 = vld [vmem:[%s197] ss:$2 sm:$0xff]
  %s199 = scalar_lea.vmem [#allocation2], 80
  %v200 = vld [vmem:[%s199] ss:$2 sm:$0xff]
  %s201 = scalar_lea.vmem [#allocation2], 96
  %v202 = vld [vmem:[%s201] ss:$2 sm:$0xff]
  %s203 = scalar_lea.vmem [#allocation2], 112
  %v204 = vld [vmem:[%s203] ss:$2 sm:$0xff]
  %s205 = scalar_lea.vmem [#allocation2], 136
  %v206 = vld [vmem:[%s205] ss:$2 sm:$0xff]
  %s207 = scalar_lea.vmem [#allocation2], 152
  %v208 = vld [vmem:[%s207] ss:$2 sm:$0xff]
  %s209 = scalar_lea.vmem [#allocation2], 168
  %v210 = vld [vmem:[%s209] ss:$2 sm:$0xff]
  %s211 = scalar_lea.vmem [#allocation2], 184
  %v212 = vld [vmem:[%s211] ss:$2 sm:$0xff]
  %s213 = scalar_lea.vmem [#allocation2], 200
  %v214 = vld [vmem:[%s213] ss:$2 sm:$0xff]
  %s215 = scalar_lea.vmem [#allocation2], 216
  %v216 = vld [vmem:[%s215] ss:$2 sm:$0xff]
  %s217 = scalar_lea.vmem [#allocation2], 232
  %v218 = vld [vmem:[%s217] ss:$2 sm:$0xff]
  %s219 = scalar_lea.vmem [#allocation2], 248
  %v220 = vld [vmem:[%s219] ss:$2 sm:$0xff]
  %v221 = vld [vmem:[%s1] sm:$0x1]
  %223 = vset.pattern.permute.xlu0 0
  %224 = vperm.xlu0 %223, %v190
  %v225 = vpop.permute.xlu0 %224
  %228 = vset.pattern.permute.xlu0 0
  %229 = vperm.xlu0 %228, %v192
  %v230 = vpop.permute.xlu0 %229
  %233 = vset.pattern.permute.xlu0 0
  %234 = vperm.xlu0 %233, %v194
  %v235 = vpop.permute.xlu0 %234
  %238 = vset.pattern.permute.xlu0 0
  %239 = vperm.xlu0 %238, %v196
  %v240 = vpop.permute.xlu0 %239
  %243 = vset.pattern.permute.xlu0 0
  %244 = vperm.xlu0 %243, %v198
  %v245 = vpop.permute.xlu0 %244
  %248 = vset.pattern.permute.xlu0 0
  %249 = vperm.xlu0 %248, %v200
  %v250 = vpop.permute.xlu0 %249
  %253 = vset.pattern.permute.xlu0 0
  %254 = vperm.xlu0 %253, %v202
  %v255 = vpop.permute.xlu0 %254
  %258 = vset.pattern.permute.xlu0 0
  %259 = vperm.xlu0 %258, %v204
  %v260 = vpop.permute.xlu0 %259
  %263 = vset.pattern.permute.xlu0 0
  %264 = vperm.xlu0 %263, %v206
  %v265 = vpop.permute.xlu0 %264
  %268 = vset.pattern.permute.xlu0 0
  %269 = vperm.xlu0 %268, %v208
  %v270 = vpop.permute.xlu0 %269
  %273 = vset.pattern.permute.xlu0 0
  %274 = vperm.xlu0 %273, %v210
  %v275 = vpop.permute.xlu0 %274
  %278 = vset.pattern.permute.xlu0 0
  %279 = vperm.xlu0 %278, %v212
  %v280 = vpop.permute.xlu0 %279
  %283 = vset.pattern.permute.xlu0 0
  %284 = vperm.xlu0 %283, %v214
  %v285 = vpop.permute.xlu0 %284
  %288 = vset.pattern.permute.xlu0 0
  %289 = vperm.xlu0 %288, %v216
  %v290 = vpop.permute.xlu0 %289
  %293 = vset.pattern.permute.xlu0 0
  %294 = vperm.xlu0 %293, %v218
  %v295 = vpop.permute.xlu0 %294
  %298 = vset.pattern.permute.xlu0 0
  %299 = vperm.xlu0 %298, %v220
  %v300 = vpop.permute.xlu0 %299
  %v303 = vlaneseq
  %v304 = vshrl.u32 %v303, 7
  %v305 = vsub.s32 0, %v304
  %v306 = vrot.slane %v221, %v305
  %v308 = vmul.f32 %v225, %v306
  %v309 = vmul.f32 %v230, %v306
  %v310 = vmul.f32 %v235, %v306
  %v311 = vmul.f32 %v240, %v306
  %v312 = vmul.f32 %v245, %v306
  %v313 = vmul.f32 %v250, %v306
  %v314 = vmul.f32 %v255, %v306
  %v315 = vmul.f32 %v260, %v306
  %v316 = vmul.f32 %v265, %v306
  %v317 = vmul.f32 %v270, %v306
  %v318 = vmul.f32 %v275, %v306
  %v319 = vmul.f32 %v280, %v306
  %v320 = vmul.f32 %v285, %v306
  %v321 = vmul.f32 %v290, %v306
  %v322 = vmul.f32 %v295, %v306
  %v323 = vmul.f32 %v300, %v306
  %v325 = vlaneseq
  %v326 = vshrl.u32 %v325, 7
  %v327 = vsub.s32 0, %v326
  %v328 = vrot.slane %v189, %v327
  %v330 = vadd.f32 %v328, %v308
  %v331 = vadd.f32 %v328, %v309
  %v332 = vadd.f32 %v328, %v310
  %v333 = vadd.f32 %v328, %v311
  %v334 = vadd.f32 %v328, %v312
  %v335 = vadd.f32 %v328, %v313
  %v336 = vadd.f32 %v328, %v314
  %v337 = vadd.f32 %v328, %v315
  %v338 = vadd.f32 %v328, %v316
  %v339 = vadd.f32 %v328, %v317
  %v340 = vadd.f32 %v328, %v318
  %v341 = vadd.f32 %v328, %v319
  %v342 = vadd.f32 %v328, %v320
  %v343 = vadd.f32 %v328, %v321
  %v344 = vadd.f32 %v328, %v322
  %v345 = vadd.f32 %v328, %v323
  %s346 = scalar_lea.vmem [#allocation2], 1
  %v347 = vld [vmem:[%s346] ss:$2 sm:$0xff]
  %s348 = scalar_lea.vmem [#allocation2], 17
  %v349 = vld [vmem:[%s348] ss:$2 sm:$0xff]
  %s350 = scalar_lea.vmem [#allocation2], 33
  %v351 = vld [vmem:[%s350] ss:$2 sm:$0xff]
  %s352 = scalar_lea.vmem [#allocation2], 49
  %v353 = vld [vmem:[%s352] ss:$2 sm:$0xff]
  %s354 = scalar_lea.vmem [#allocation2], 65
  %v355 = vld [vmem:[%s354] ss:$2 sm:$0xff]
  %s356 = scalar_lea.vmem [#allocation2], 81
  %v357 = vld [vmem:[%s356] ss:$2 sm:$0xff]
  %s358 = scalar_lea.vmem [#allocation2], 97
  %v359 = vld [vmem:[%s358] ss:$2 sm:$0xff]
  %s360 = scalar_lea.vmem [#allocation2], 113
  %v361 = vld [vmem:[%s360] ss:$2 sm:$0xff]
  %s362 = scalar_lea.vmem [#allocation2], 137
  %v363 = vld [vmem:[%s362] ss:$2 sm:$0xff]
  %s364 = scalar_lea.vmem [#allocation2], 153
  %v365 = vld [vmem:[%s364] ss:$2 sm:$0xff]
  %s366 = scalar_lea.vmem [#allocation2], 169
  %v367 = vld [vmem:[%s366] ss:$2 sm:$0xff]
  %s368 = scalar_lea.vmem [#allocation2], 185
  %v369 = vld [vmem:[%s368] ss:$2 sm:$0xff]
  %s370 = scalar_lea.vmem [#allocation2], 201
  %v371 = vld [vmem:[%s370] ss:$2 sm:$0xff]
  %s372 = scalar_lea.vmem [#allocation2], 217
  %v373 = vld [vmem:[%s372] ss:$2 sm:$0xff]
  %s374 = scalar_lea.vmem [#allocation2], 233
  %v375 = vld [vmem:[%s374] ss:$2 sm:$0xff]
  %s376 = scalar_lea.vmem [#allocation2], 249
  %v377 = vld [vmem:[%s376] ss:$2 sm:$0xff]
  %s378 = scalar_lea.vmem %s1, 1
  %v379 = vld [vmem:[%s378] sm:$0x1]
  %381 = vset.pattern.permute.xlu0 0
  %382 = vperm.xlu0 %381, %v347
  %v383 = vpop.permute.xlu0 %382
  %386 = vset.pattern.permute.xlu0 0
  %387 = vperm.xlu0 %386, %v349
  %v388 = vpop.permute.xlu0 %387
  %391 = vset.pattern.permute.xlu0 0
  %392 = vperm.xlu0 %391, %v351
  %v393 = vpop.permute.xlu0 %392
  %396 = vset.pattern.permute.xlu0 0
  %397 = vperm.xlu0 %396, %v353
  %v398 = vpop.permute.xlu0 %397
  %401 = vset.pattern.permute.xlu0 0
  %402 = vperm.xlu0 %401, %v355
  %v403 = vpop.permute.xlu0 %402
  %406 = vset.pattern.permute.xlu0 0
  %407 = vperm.xlu0 %406, %v357
  %v408 = vpop.permute.xlu0 %407
  %411 = vset.pattern.permute.xlu0 0
  %412 = vperm.xlu0 %411, %v359
  %v413 = vpop.permute.xlu0 %412
  %416 = vset.pattern.permute.xlu0 0
  %417 = vperm.xlu0 %416, %v361
  %v418 = vpop.permute.xlu0 %417
  %421 = vset.pattern.permute.xlu0 0
  %422 = vperm.xlu0 %421, %v363
  %v423 = vpop.permute.xlu0 %422
  %426 = vset.pattern.permute.xlu0 0
  %427 = vperm.xlu0 %426, %v365
  %v428 = vpop.permute.xlu0 %427
  %431 = vset.pattern.permute.xlu0 0
  %432 = vperm.xlu0 %431, %v367
  %v433 = vpop.permute.xlu0 %432
  %436 = vset.pattern.permute.xlu0 0
  %437 = vperm.xlu0 %436, %v369
  %v438 = vpop.permute.xlu0 %437
  %441 = vset.pattern.permute.xlu0 0
  %442 = vperm.xlu0 %441, %v371
  %v443 = vpop.permute.xlu0 %442
  %446 = vset.pattern.permute.xlu0 0
  %447 = vperm.xlu0 %446, %v373
  %v448 = vpop.permute.xlu0 %447
  %451 = vset.pattern.permute.xlu0 0
  %452 = vperm.xlu0 %451, %v375
  %v453 = vpop.permute.xlu0 %452
  %456 = vset.pattern.permute.xlu0 0
  %457 = vperm.xlu0 %456, %v377
  %v458 = vpop.permute.xlu0 %457
  %v461 = vlaneseq
  %v462 = vshrl.u32 %v461, 7
  %v463 = vsub.s32 0, %v462
  %v464 = vrot.slane %v379, %v463
  %v466 = vmul.f32 %v383, %v464
  %v467 = vmul.f32 %v388, %v464
  %v468 = vmul.f32 %v393, %v464
  %v469 = vmul.f32 %v398, %v464
  %v470 = vmul.f32 %v403, %v464
  %v471 = vmul.f32 %v408, %v464
  %v472 = vmul.f32 %v413, %v464
  %v473 = vmul.f32 %v418, %v464
  %v474 = vmul.f32 %v423, %v464
  %v475 = vmul.f32 %v428, %v464
  %v476 = vmul.f32 %v433, %v464
  %v477 = vmul.f32 %v438, %v464
  %v478 = vmul.f32 %v443, %v464
  %v479 = vmul.f32 %v448, %v464
  %v480 = vmul.f32 %v453, %v464
  %v481 = vmul.f32 %v458, %v464
  %v482 = vadd.f32 %v330, %v466
  %v483 = vadd.f32 %v331, %v467
  %v484 = vadd.f32 %v332, %v468
  %v485 = vadd.f32 %v333, %v469
  %v486 = vadd.f32 %v334, %v470
  %v487 = vadd.f32 %v335, %v471
  %v488 = vadd.f32 %v336, %v472
  %v489 = vadd.f32 %v337, %v473
  %v490 = vadd.f32 %v338, %v474
  %v491 = vadd.f32 %v339, %v475
  %v492 = vadd.f32 %v340, %v476
  %v493 = vadd.f32 %v341, %v477
  %v494 = vadd.f32 %v342, %v478
  %v495 = vadd.f32 %v343, %v479
  %v496 = vadd.f32 %v344, %v480
  %v497 = vadd.f32 %v345, %v481
  %s498 = scalar_lea.vmem [#allocation2], 2
  %v499 = vld [vmem:[%s498] ss:$2 sm:$0xff]
  %s500 = scalar_lea.vmem [#allocation2], 18
  %v501 = vld [vmem:[%s500] ss:$2 sm:$0xff]
  %s502 = scalar_lea.vmem [#allocation2], 34
  %v503 = vld [vmem:[%s502] ss:$2 sm:$0xff]
  %s504 = scalar_lea.vmem [#allocation2], 50
  %v505 = vld [vmem:[%s504] ss:$2 sm:$0xff]
  %s506 = scalar_lea.vmem [#allocation2], 66
  %v507 = vld [vmem:[%s506] ss:$2 sm:$0xff]
  %s508 = scalar_lea.vmem [#allocation2], 82
  %v509 = vld [vmem:[%s508] ss:$2 sm:$0xff]
  %s510 = scalar_lea.vmem [#allocation2], 98
  %v511 = vld [vmem:[%s510] ss:$2 sm:$0xff]
  %s512 = scalar_lea.vmem [#allocation2], 114
  %v513 = vld [vmem:[%s512] ss:$2 sm:$0xff]
  %s514 = scalar_lea.vmem [#allocation2], 138
  %v515 = vld [vmem:[%s514] ss:$2 sm:$0xff]
  %s516 = scalar_lea.vmem [#allocation2], 154
  %v517 = vld [vmem:[%s516] ss:$2 sm:$0xff]
  %s518 = scalar_lea.vmem [#allocation2], 170
  %v519 = vld [vmem:[%s518] ss:$2 sm:$0xff]
  %s520 = scalar_lea.vmem [#allocation2], 186
  %v521 = vld [vmem:[%s520] ss:$2 sm:$0xff]
  %s522 = scalar_lea.vmem [#allocation2], 202
  %v523 = vld [vmem:[%s522] ss:$2 sm:$0xff]
  %s524 = scalar_lea.vmem [#allocation2], 218
  %v525 = vld [vmem:[%s524] ss:$2 sm:$0xff]
  %s526 = scalar_lea.vmem [#allocation2], 234
  %v527 = vld [vmem:[%s526] ss:$2 sm:$0xff]
  %s528 = scalar_lea.vmem [#allocation2], 250
  %v529 = vld [vmem:[%s528] ss:$2 sm:$0xff]
  %s530 = scalar_lea.vmem %s1, 2
  %v531 = vld [vmem:[%s530] sm:$0x1]
  %533 = vset.pattern.permute.xlu0 0
  %534 = vperm.xlu0 %533, %v499
  %v535 = vpop.permute.xlu0 %534
  %538 = vset.pattern.permute.xlu0 0
  %539 = vperm.xlu0 %538, %v501
  %v540 = vpop.permute.xlu0 %539
  %543 = vset.pattern.permute.xlu0 0
  %544 = vperm.xlu0 %543, %v503
  %v545 = vpop.permute.xlu0 %544
  %548 = vset.pattern.permute.xlu0 0
  %549 = vperm.xlu0 %548, %v505
  %v550 = vpop.permute.xlu0 %549
  %553 = vset.pattern.permute.xlu0 0
  %554 = vperm.xlu0 %553, %v507
  %v555 = vpop.permute.xlu0 %554
  %558 = vset.pattern.permute.xlu0 0
  %559 = vperm.xlu0 %558, %v509
  %v560 = vpop.permute.xlu0 %559
  %563 = vset.pattern.permute.xlu0 0
  %564 = vperm.xlu0 %563, %v511
  %v565 = vpop.permute.xlu0 %564
  %568 = vset.pattern.permute.xlu0 0
  %569 = vperm.xlu0 %568, %v513
  %v570 = vpop.permute.xlu0 %569
  %573 = vset.pattern.permute.xlu0 0
  %574 = vperm.xlu0 %573, %v515
  %v575 = vpop.permute.xlu0 %574
  %578 = vset.pattern.permute.xlu0 0
  %579 = vperm.xlu0 %578, %v517
  %v580 = vpop.permute.xlu0 %579
  %583 = vset.pattern.permute.xlu0 0
  %584 = vperm.xlu0 %583, %v519
  %v585 = vpop.permute.xlu0 %584
  %588 = vset.pattern.permute.xlu0 0
  %589 = vperm.xlu0 %588, %v521
  %v590 = vpop.permute.xlu0 %589
  %593 = vset.pattern.permute.xlu0 0
  %594 = vperm.xlu0 %593, %v523
  %v595 = vpop.permute.xlu0 %594
  %598 = vset.pattern.permute.xlu0 0
  %599 = vperm.xlu0 %598, %v525
  %v600 = vpop.permute.xlu0 %599
  %603 = vset.pattern.permute.xlu0 0
  %604 = vperm.xlu0 %603, %v527
  %v605 = vpop.permute.xlu0 %604
  %608 = vset.pattern.permute.xlu0 0
  %609 = vperm.xlu0 %608, %v529
  %v610 = vpop.permute.xlu0 %609
  %v613 = vlaneseq
  %v614 = vshrl.u32 %v613, 7
  %v615 = vsub.s32 0, %v614
  %v616 = vrot.slane %v531, %v615
  %v618 = vmul.f32 %v535, %v616
  %v619 = vmul.f32 %v540, %v616
  %v620 = vmul.f32 %v545, %v616
  %v621 = vmul.f32 %v550, %v616
  %v622 = vmul.f32 %v555, %v616
  %v623 = vmul.f32 %v560, %v616
  %v624 = vmul.f32 %v565, %v616
  %v625 = vmul.f32 %v570, %v616
  %v626 = vmul.f32 %v575, %v616
  %v627 = vmul.f32 %v580, %v616
  %v628 = vmul.f32 %v585, %v616
  %v629 = vmul.f32 %v590, %v616
  %v630 = vmul.f32 %v595, %v616
  %v631 = vmul.f32 %v600, %v616
  %v632 = vmul.f32 %v605, %v616
  %v633 = vmul.f32 %v610, %v616
  %v634 = vadd.f32 %v482, %v618
  %v635 = vadd.f32 %v483, %v619
  %v636 = vadd.f32 %v484, %v620
  %v637 = vadd.f32 %v485, %v621
  %v638 = vadd.f32 %v486, %v622
  %v639 = vadd.f32 %v487, %v623
  %v640 = vadd.f32 %v488, %v624
  %v641 = vadd.f32 %v489, %v625
  %v642 = vadd.f32 %v490, %v626
  %v643 = vadd.f32 %v491, %v627
  %v644 = vadd.f32 %v492, %v628
  %v645 = vadd.f32 %v493, %v629
  %v646 = vadd.f32 %v494, %v630
  %v647 = vadd.f32 %v495, %v631
  %v648 = vadd.f32 %v496, %v632
  %v649 = vadd.f32 %v497, %v633
  %vm650 = vcmp.gt.f32.partialorder %v634, 0.0
  %vm651 = vcmp.gt.f32.partialorder %v635, 0.0
  %vm652 = vcmp.gt.f32.partialorder %v636, 0.0
  %vm653 = vcmp.gt.f32.partialorder %v637, 0.0
  %vm654 = vcmp.gt.f32.partialorder %v638, 0.0
  %vm655 = vcmp.gt.f32.partialorder %v639, 0.0
  %vm656 = vcmp.gt.f32.partialorder %v640, 0.0
  %vm657 = vcmp.gt.f32.partialorder %v641, 0.0
  %vm658 = vcmp.gt.f32.partialorder %v642, 0.0
  %vm659 = vcmp.gt.f32.partialorder %v643, 0.0
  %vm660 = vcmp.gt.f32.partialorder %v644, 0.0
  %vm661 = vcmp.gt.f32.partialorder %v645, 0.0
  %vm662 = vcmp.gt.f32.partialorder %v646, 0.0
  %vm663 = vcmp.gt.f32.partialorder %v647, 0.0
  %vm664 = vcmp.gt.f32.partialorder %v648, 0.0
  %vm665 = vcmp.gt.f32.partialorder %v649, 0.0
  %v666 = vmul.f32 %v634, 0.2
  %v667 = vmul.f32 %v635, 0.2
  %v668 = vmul.f32 %v636, 0.2
  %v669 = vmul.f32 %v637, 0.2
  %v670 = vmul.f32 %v638, 0.2
  %v671 = vmul.f32 %v639, 0.2
  %v672 = vmul.f32 %v640, 0.2
  %v673 = vmul.f32 %v641, 0.2
  %v674 = vmul.f32 %v642, 0.2
  %v675 = vmul.f32 %v643, 0.2
  %v676 = vmul.f32 %v644, 0.2
  %v677 = vmul.f32 %v645, 0.2
  %v678 = vmul.f32 %v646, 0.2
  %v679 = vmul.f32 %v647, 0.2
  %v680 = vmul.f32 %v648, 0.2
  %v681 = vmul.f32 %v649, 0.2
  %v682 = vsel %vm650, %v634, %v666
  %v683 = vsel %vm651, %v635, %v667
  %v684 = vsel %vm652, %v636, %v668
  %v685 = vsel %vm653, %v637, %v669
  %v686 = vsel %vm654, %v638, %v670
  %v687 = vsel %vm655, %v639, %v671
  %v688 = vsel %vm656, %v640, %v672
  %v689 = vsel %vm657, %v641, %v673
  %v690 = vsel %vm658, %v642, %v674
  %v691 = vsel %vm659, %v643, %v675
  %v692 = vsel %vm660, %v644, %v676
  %v693 = vsel %vm661, %v645, %v677
  %v694 = vsel %vm662, %v646, %v678
  %v695 = vsel %vm663, %v647, %v679
  %v696 = vsel %vm664, %v648, %v680
  %v697 = vsel %vm665, %v649, %v681
  %698 = vst.msk [vmem:[#allocation3 + $0x1] sm:$0xff] %vm93, %v682
  %699 = vst.msk [vmem:[#allocation3 + $0x9] sm:$0xff] %vm93, %v683
  %700 = vst.msk [vmem:[#allocation3 + $0x11] sm:$0xff] %vm93, %v684
  %701 = vst.msk [vmem:[#allocation3 + $0x19] sm:$0xff] %vm93, %v685
  %702 = vst.msk [vmem:[#allocation3 + $0x21] sm:$0xff] %vm93, %v686
  %703 = vst.msk [vmem:[#allocation3 + $0x29] sm:$0xff] %vm93, %v687
  %704 = vst.msk [vmem:[#allocation3 + $0x31] sm:$0xff] %vm93, %v688
  %705 = vst.msk [vmem:[#allocation3 + $0x39] sm:$0xff] %vm93, %v689
  %706 = vst.msk [vmem:[#allocation3 + $0x49] sm:$0xff] %vm93, %v690
  %707 = vst.msk [vmem:[#allocation3 + $0x51] sm:$0xff] %vm93, %v691
  %708 = vst.msk [vmem:[#allocation3 + $0x59] sm:$0xff] %vm93, %v692
  %709 = vst.msk [vmem:[#allocation3 + $0x61] sm:$0xff] %vm93, %v693
  %710 = vst.msk [vmem:[#allocation3 + $0x69] sm:$0xff] %vm93, %v694
  %711 = vst.msk [vmem:[#allocation3 + $0x71] sm:$0xff] %vm93, %v695
  %712 = vst.msk [vmem:[#allocation3 + $0x79] sm:$0xff] %vm93, %v696
  %713 = vst.msk [vmem:[#allocation3 + $0x81] sm:$0xff] %vm93, %v697
  %v714 = vld [vmem:[%s4] sm:$0x1]
  %v715 = vld [vmem:[#allocation3] ss:$2 sm:$0xff]
  %s716 = scalar_lea.vmem [#allocation3], 16
  %v717 = vld [vmem:[%s716] ss:$2 sm:$0xff]
  %s718 = scalar_lea.vmem [#allocation3], 32
  %v719 = vld [vmem:[%s718] ss:$2 sm:$0xff]
  %s720 = scalar_lea.vmem [#allocation3], 48
  %v721 = vld [vmem:[%s720] ss:$2 sm:$0xff]
  %s722 = scalar_lea.vmem [#allocation3], 72
  %v723 = vld [vmem:[%s722] ss:$2 sm:$0xff]
  %s724 = scalar_lea.vmem [#allocation3], 88
  %v725 = vld [vmem:[%s724] ss:$2 sm:$0xff]
  %s726 = scalar_lea.vmem [#allocation3], 104
  %v727 = vld [vmem:[%s726] ss:$2 sm:$0xff]
  %s728 = scalar_lea.vmem [#allocation3], 120
  %v729 = vld [vmem:[%s728] ss:$2 sm:$0xff]
  %v730 = vpack.c.bf16 %v717, %v715
  %v731 = vpack.c.bf16 %v721, %v719
  %v732 = vpack.c.bf16 %v725, %v723
  %v733 = vpack.c.bf16 %v729, %v727
  %v734 = vld [vmem:[%s3] sm:$0xf]
  %v735 = vld [vmem:[%s3 + $0x4] sm:$0xf]
  %v738 = vunpack.c.l.b16 %v734
  %v739 = vunpack.c.l.b16 %v735
  %v740 = vpack.c.b16 %v739, %v738
  %v743 = vsel %vm93, %v730, 0
  %v746 = vsel %vm93, %v731, 0
  %v749 = vsel %vm93, %v732, 0
  %v752 = vsel %vm93, %v733, 0
  %754 = vmatprep.subr.bf16.mxu0 0
  %755 = vmatpush1.bf16.msra.mxu0 %v740
  %756 = vmatprep.subr.bf16.mxu0 0
  %757 = vmatpush1.bf16.msra.mxu0 0
  %758 = vmatprep.subr.bf16.mxu0 0
  %759 = vmatpush1.bf16.msra.mxu0 0
  %760 = vmatprep.subr.bf16.mxu0 0
  %761 = vmatpush1.bf16.msra.mxu0 0
  %762 = vmatprep.subr.bf16.mxu0 0
  %763 = vmatpush1.bf16.msra.mxu0 0
  %764 = vmatprep.subr.bf16.mxu0 0
  %765 = vmatpush1.bf16.msra.mxu0 0
  %766 = vmatprep.subr.bf16.mxu0 0
  %767 = vmatpush1.bf16.msra.mxu0 0
  %768 = vmatprep.subr.bf16.mxu0 0
  %769 = vmatpush1.bf16.msra.mxu0 0
  %770 = vmatprep.subr.bf16.mxu0 0
  %771 = vmatpush1.bf16.msra.mxu0 0
  %772 = vmatprep.subr.bf16.mxu0 0
  %773 = vmatpush1.bf16.msra.mxu0 0
  %774 = vmatprep.subr.bf16.mxu0 0
  %775 = vmatpush1.bf16.msra.mxu0 0
  %776 = vmatprep.subr.bf16.mxu0 0
  %777 = vmatpush1.bf16.msra.mxu0 0
  %778 = vmatprep.subr.bf16.mxu0 0
  %779 = vmatpush1.bf16.msra.mxu0 0
  %780 = vmatprep.subr.bf16.mxu0 0
  %781 = vmatpush1.bf16.msra.mxu0 0
  %782 = vmatprep.subr.bf16.mxu0 0
  %783 = vmatpush1.bf16.msra.mxu0 0
  %784 = vmatprep.subr.bf16.mxu0 0
  %785 = vmatpush1.bf16.msra.mxu0 0
  %786 = vmatprep.mubr.bf16.mxu0 0
  %787 = vmatmul.mubr.bf16.gmra.mrb[0].mxu0 %v743
  %v788 = vpop.f32.mrb[0].mxu0
  %v789 = vadd.f32 0.0, %v788
  %v790 = vpop.f32.mrb[0].mxu0
  %v791 = vpop.f32.mrb[0].mxu0
  %v792 = vadd.f32 0.0, %v791
  %v793 = vpop.f32.mrb[0].mxu0
  %794 = vmatprep.mubr.bf16.mxu0 0
  %795 = vmatmul.mubr.bf16.gmra.mrb[0].mxu0 %v746
  %v796 = vpop.f32.mrb[0].mxu0
  %v797 = vadd.f32 0.0, %v796
  %v798 = vpop.f32.mrb[0].mxu0
  %v799 = vpop.f32.mrb[0].mxu0
  %v800 = vadd.f32 0.0, %v799
  %v801 = vpop.f32.mrb[0].mxu0
  %802 = vmatprep.mubr.bf16.mxu0 0
  %803 = vmatmul.mubr.bf16.gmra.mrb[0].mxu0 %v749
  %v804 = vpop.f32.mrb[0].mxu0
  %v805 = vadd.f32 0.0, %v804
  %v806 = vpop.f32.mrb[0].mxu0
  %v807 = vpop.f32.mrb[0].mxu0
  %v808 = vadd.f32 0.0, %v807
  %v809 = vpop.f32.mrb[0].mxu0
  %810 = vmatprep.mubr.bf16.mxu0 0
  %811 = vmatmul.mubr.bf16.gmra.mrb[0].mxu0 %v752
  %v812 = vpop.f32.mrb[0].mxu0
  %v813 = vadd.f32 0.0, %v812
  %v814 = vpop.f32.mrb[0].mxu0
  %v815 = vpop.f32.mrb[0].mxu0
  %v816 = vadd.f32 0.0, %v815
  %v817 = vpop.f32.mrb[0].mxu0
  %818 = vdwg.mxu0
  %v820 = vlaneseq
  %v821 = vshrl.u32 %v820, 7
  %v822 = vsub.s32 0, %v821
  %v823 = vrot.slane %v714, %v822
  %v825 = vadd.f32 %v823, %v789
  %v826 = vadd.f32 %v823, %v792
  %v827 = vadd.f32 %v823, %v797
  %v828 = vadd.f32 %v823, %v800
  %v829 = vadd.f32 %v823, %v805
  %v830 = vadd.f32 %v823, %v808
  %v831 = vadd.f32 %v823, %v813
  %v832 = vadd.f32 %v823, %v816
  %s833 = scalar_lea.vmem [#allocation3], 1
  %v834 = vld [vmem:[%s833] ss:$2 sm:$0xff]
  %s835 = scalar_lea.vmem [#allocation3], 17
  %v836 = vld [vmem:[%s835] ss:$2 sm:$0xff]
  %s837 = scalar_lea.vmem [#allocation3], 33
  %v838 = vld [vmem:[%s837] ss:$2 sm:$0xff]
  %s839 = scalar_lea.vmem [#allocation3], 49
  %v840 = vld [vmem:[%s839] ss:$2 sm:$0xff]
  %s841 = scalar_lea.vmem [#allocation3], 73
  %v842 = vld [vmem:[%s841] ss:$2 sm:$0xff]
  %s843 = scalar_lea.vmem [#allocation3], 89
  %v844 = vld [vmem:[%s843] ss:$2 sm:$0xff]
  %s845 = scalar_lea.vmem [#allocation3], 105
  %v846 = vld [vmem:[%s845] ss:$2 sm:$0xff]
  %s847 = scalar_lea.vmem [#allocation3], 121
  %v848 = vld [vmem:[%s847] ss:$2 sm:$0xff]
  %v849 = vpack.c.bf16 %v836, %v834
  %v850 = vpack.c.bf16 %v840, %v838
  %v851 = vpack.c.bf16 %v844, %v842
  %v852 = vpack.c.bf16 %v848, %v846
  %s853 = scalar_lea.vmem %s3, 8
  %v854 = vld [vmem:[%s853] sm:$0xf]
  %v855 = vld [vmem:[%s853 + $0x4] sm:$0xf]
  %v858 = vunpack.c.l.b16 %v854
  %v859 = vunpack.c.l.b16 %v855
  %v860 = vpack.c.b16 %v859, %v858
  %v863 = vsel %vm93, %v849, 0
  %v866 = vsel %vm93, %v850, 0
  %v869 = vsel %vm93, %v851, 0
  %v872 = vsel %vm93, %v852, 0
  %874 = vmatprep.subr.bf16.mxu0 0
  %875 = vmatpush1.bf16.msra.mxu0 %v860
  %876 = vmatprep.subr.bf16.mxu0 0
  %877 = vmatpush1.bf16.msra.mxu0 0
  %878 = vmatprep.subr.bf16.mxu0 0
  %879 = vmatpush1.bf16.msra.mxu0 0
  %880 = vmatprep.subr.bf16.mxu0 0
  %881 = vmatpush1.bf16.msra.mxu0 0
  %882 = vmatprep.subr.bf16.mxu0 0
  %883 = vmatpush1.bf16.msra.mxu0 0
  %884 = vmatprep.subr.bf16.mxu0 0
  %885 = vmatpush1.bf16.msra.mxu0 0
  %886 = vmatprep.subr.bf16.mxu0 0
  %887 = vmatpush1.bf16.msra.mxu0 0
  %888 = vmatprep.subr.bf16.mxu0 0
  %889 = vmatpush1.bf16.msra.mxu0 0
  %890 = vmatprep.subr.bf16.mxu0 0
  %891 = vmatpush1.bf16.msra.mxu0 0
  %892 = vmatprep.subr.bf16.mxu0 0
  %893 = vmatpush1.bf16.msra.mxu0 0
  %894 = vmatprep.subr.bf16.mxu0 0
  %895 = vmatpush1.bf16.msra.mxu0 0
  %896 = vmatprep.subr.bf16.mxu0 0
  %897 = vmatpush1.bf16.msra.mxu0 0
  %898 = vmatprep.subr.bf16.mxu0 0
  %899 = vmatpush1.bf16.msra.mxu0 0
  %900 = vmatprep.subr.bf16.mxu0 0
  %901 = vmatpush1.bf16.msra.mxu0 0
  %902 = vmatprep.subr.bf16.mxu0 0
  %903 = vmatpush1.bf16.msra.mxu0 0
  %904 = vmatprep.subr.bf16.mxu0 0
  %905 = vmatpush1.bf16.msra.mxu0 0
  %906 = vmatprep.mubr.bf16.mxu0 0
  %907 = vmatmul.mubr.bf16.gmra.mrb[0].mxu0 %v863
  %v908 = vpop.f32.mrb[0].mxu0
  %v909 = vadd.f32 0.0, %v908
  %v910 = vpop.f32.mrb[0].mxu0
  %v911 = vpop.f32.mrb[0].mxu0
  %v912 = vadd.f32 0.0, %v911
  %v913 = vpop.f32.mrb[0].mxu0
  %914 = vmatprep.mubr.bf16.mxu0 0
  %915 = vmatmul.mubr.bf16.gmra.mrb[0].mxu0 %v866
  %v916 = vpop.f32.mrb[0].mxu0
  %v917 = vadd.f32 0.0, %v916
  %v918 = vpop.f32.mrb[0].mxu0
  %v919 = vpop.f32.mrb[0].mxu0
  %v920 = vadd.f32 0.0, %v919
  %v921 = vpop.f32.mrb[0].mxu0
  %922 = vmatprep.mubr.bf16.mxu0 0
  %923 = vmatmul.mubr.bf16.gmra.mrb[0].mxu0 %v869
  %v924 = vpop.f32.mrb[0].mxu0
  %v925 = vadd.f32 0.0, %v924
  %v926 = vpop.f32.mrb[0].mxu0
  %v927 = vpop.f32.mrb[0].mxu0
  %v928 = vadd.f32 0.0, %v927
  %v929 = vpop.f32.mrb[0].mxu0
  %930 = vmatprep.mubr.bf16.mxu0 0
  %931 = vmatmul.mubr.bf16.gmra.mrb[0].mxu0 %v872
  %v932 = vpop.f32.mrb[0].mxu0
  %v933 = vadd.f32 0.0, %v932
  %v934 = vpop.f32.mrb[0].mxu0
  %v935 = vpop.f32.mrb[0].mxu0
  %v936 = vadd.f32 0.0, %v935
  %v937 = vpop.f32.mrb[0].mxu0
  %938 = vdwg.mxu0
  %v939 = vadd.f32 %v825, %v909
  %v940 = vadd.f32 %v826, %v912
  %v941 = vadd.f32 %v827, %v917
  %v942 = vadd.f32 %v828, %v920
  %v943 = vadd.f32 %v829, %v925
  %v944 = vadd.f32 %v830, %v928
  %v945 = vadd.f32 %v831, %v933
  %v946 = vadd.f32 %v832, %v936
  %s947 = scalar_lea.vmem [#allocation3], 2
  %v948 = vld [vmem:[%s947] ss:$2 sm:$0xff]
  %s949 = scalar_lea.vmem [#allocation3], 18
  %v950 = vld [vmem:[%s949] ss:$2 sm:$0xff]
  %s951 = scalar_lea.vmem [#allocation3], 34
  %v952 = vld [vmem:[%s951] ss:$2 sm:$0xff]
  %s953 = scalar_lea.vmem [#allocation3], 50
  %v954 = vld [vmem:[%s953] ss:$2 sm:$0xff]
  %s955 = scalar_lea.vmem [#allocation3], 74
  %v956 = vld [vmem:[%s955] ss:$2 sm:$0xff]
  %s957 = scalar_lea.vmem [#allocation3], 90
  %v958 = vld [vmem:[%s957] ss:$2 sm:$0xff]
  %s959 = scalar_lea.vmem [#allocation3], 106
  %v960 = vld [vmem:[%s959] ss:$2 sm:$0xff]
  %s961 = scalar_lea.vmem [#allocation3], 122
  %v962 = vld [vmem:[%s961] ss:$2 sm:$0xff]
  %v963 = vpack.c.bf16 %v950, %v948
  %v964 = vpack.c.bf16 %v954, %v952
  %v965 = vpack.c.bf16 %v958, %v956
  %v966 = vpack.c.bf16 %v962, %v960
  %s967 = scalar_lea.vmem %s3, 16
  %v968 = vld [vmem:[%s967] sm:$0xf]
  %v969 = vld [vmem:[%s967 + $0x4] sm:$0xf]
  %v972 = vunpack.c.l.b16 %v968
  %v973 = vunpack.c.l.b16 %v969
  %v974 = vpack.c.b16 %v973, %v972
  %v977 = vsel %vm93, %v963, 0
  %v980 = vsel %vm93, %v964, 0
  %v983 = vsel %vm93, %v965, 0
  %v986 = vsel %vm93, %v966, 0
  %988 = vmatprep.subr.bf16.mxu0 0
  %989 = vmatpush1.bf16.msra.mxu0 %v974
  %990 = vmatprep.subr.bf16.mxu0 0
  %991 = vmatpush1.bf16.msra.mxu0 0
  %992 = vmatprep.subr.bf16.mxu0 0
  %993 = vmatpush1.bf16.msra.mxu0 0
  %994 = vmatprep.subr.bf16.mxu0 0
  %995 = vmatpush1.bf16.msra.mxu0 0
  %996 = vmatprep.subr.bf16.mxu0 0
  %997 = vmatpush1.bf16.msra.mxu0 0
  %998 = vmatprep.subr.bf16.mxu0 0
  %999 = vmatpush1.bf16.msra.mxu0 0
  %1000 = vmatprep.subr.bf16.mxu0 0
  %1001 = vmatpush1.bf16.msra.mxu0 0
  %1002 = vmatprep.subr.bf16.mxu0 0
  %1003 = vmatpush1.bf16.msra.mxu0 0
  %1004 = vmatprep.subr.bf16.mxu0 0
  %1005 = vmatpush1.bf16.msra.mxu0 0
  %1006 = vmatprep.subr.bf16.mxu0 0
  %1007 = vmatpush1.bf16.msra.mxu0 0
  %1008 = vmatprep.subr.bf16.mxu0 0
  %1009 = vmatpush1.bf16.msra.mxu0 0
  %1010 = vmatprep.subr.bf16.mxu0 0
  %1011 = vmatpush1.bf16.msra.mxu0 0
  %1012 = vmatprep.subr.bf16.mxu0 0
  %1013 = vmatpush1.bf16.msra.mxu0 0
  %1014 = vmatprep.subr.bf16.mxu0 0
  %1015 = vmatpush1.bf16.msra.mxu0 0
  %1016 = vmatprep.subr.bf16.mxu0 0
  %1017 = vmatpush1.bf16.msra.mxu0 0
  %1018 = vmatprep.subr.bf16.mxu0 0
  %1019 = vmatpush1.bf16.msra.mxu0 0
  %1020 = vmatprep.mubr.bf16.mxu0 0
  %1021 = vmatmul.mubr.bf16.gmra.mrb[0].mxu0 %v977
  %v1022 = vpop.f32.mrb[0].mxu0
  %v1023 = vadd.f32 0.0, %v1022
  %v1024 = vpop.f32.mrb[0].mxu0
  %v1025 = vpop.f32.mrb[0].mxu0
  %v1026 = vadd.f32 0.0, %v1025
  %v1027 = vpop.f32.mrb[0].mxu0
  %1028 = vmatprep.mubr.bf16.mxu0 0
  %1029 = vmatmul.mubr.bf16.gmra.mrb[0].mxu0 %v980
  %v1030 = vpop.f32.mrb[0].mxu0
  %v1031 = vadd.f32 0.0, %v1030
  %v1032 = vpop.f32.mrb[0].mxu0
  %v1033 = vpop.f32.mrb[0].mxu0
  %v1034 = vadd.f32 0.0, %v1033
  %v1035 = vpop.f32.mrb[0].mxu0
  %1036 = vmatprep.mubr.bf16.mxu0 0
  %1037 = vmatmul.mubr.bf16.gmra.mrb[0].mxu0 %v983
  %v1038 = vpop.f32.mrb[0].mxu0
  %v1039 = vadd.f32 0.0, %v1038
  %v1040 = vpop.f32.mrb[0].mxu0
  %v1041 = vpop.f32.mrb[0].mxu0
  %v1042 = vadd.f32 0.0, %v1041
  %v1043 = vpop.f32.mrb[0].mxu0
  %1044 = vmatprep.mubr.bf16.mxu0 0
  %1045 = vmatmul.mubr.bf16.gmra.mrb[0].mxu0 %v986
  %v1046 = vpop.f32.mrb[0].mxu0
  %v1047 = vadd.f32 0.0, %v1046
  %v1048 = vpop.f32.mrb[0].mxu0
  %v1049 = vpop.f32.mrb[0].mxu0
  %v1050 = vadd.f32 0.0, %v1049
  %v1051 = vpop.f32.mrb[0].mxu0
  %1052 = vdwg.mxu0
  %v1053 = vadd.f32 %v939, %v1023
  %v1054 = vadd.f32 %v940, %v1026
  %v1055 = vadd.f32 %v941, %v1031
  %v1056 = vadd.f32 %v942, %v1034
  %v1057 = vadd.f32 %v943, %v1039
  %v1058 = vadd.f32 %v944, %v1042
  %v1059 = vadd.f32 %v945, %v1047
  %v1060 = vadd.f32 %v946, %v1050
  %v1061 = vsel %vm113, %v1053, 0.0
  %v1062 = vsel %vm113, %v1054, 0.0
  %v1063 = vadd.f32 %v1061, %v1062
  %v1064 = vsel %vm113, %v1055, 0.0
  %v1065 = vadd.f32 %v1063, %v1064
  %v1066 = vsel %vm113, %v1056, 0.0
  %v1067 = vadd.f32 %v1065, %v1066
  %v1068 = vsel %vm113, %v1057, 0.0
  %v1069 = vadd.f32 %v1067, %v1068
  %v1070 = vsel %vm113, %v1058, 0.0
  %v1071 = vadd.f32 %v1069, %v1070
  %v1072 = vsel %vm113, %v1059, 0.0
  %v1073 = vadd.f32 %v1071, %v1072
  %v1074 = vsel %vm113, %v1060, 0.0
  %v1075 = vadd.f32 %v1073, %v1074
  %v1076 = vrot.slane %v1075, 4
  %v1077 = vadd.f32 %v1075, %v1076
  %v1078 = vrot.slane %v1077, 2
  %v1079 = vadd.f32 %v1077, %v1078
  %v1080 = vrot.slane %v1079, 1
  %v1081 = vadd.f32 %v1079, %v1080
  %v1082 = vmul.f32 %v1053, %v1053
  %v1083 = vmul.f32 %v1054, %v1054
  %v1084 = vmul.f32 %v1055, %v1055
  %v1085 = vmul.f32 %v1056, %v1056
  %v1086 = vmul.f32 %v1057, %v1057
  %v1087 = vmul.f32 %v1058, %v1058
  %v1088 = vmul.f32 %v1059, %v1059
  %v1089 = vmul.f32 %v1060, %v1060
  %v1090 = vsel %vm113, %v1082, 0.0
  %v1091 = vsel %vm113, %v1083, 0.0
  %v1092 = vadd.f32 %v1090, %v1091
  %v1093 = vsel %vm113, %v1084, 0.0
  %v1094 = vadd.f32 %v1092, %v1093
  %v1095 = vsel %vm113, %v1085, 0.0
  %v1096 = vadd.f32 %v1094, %v1095
  %v1097 = vsel %vm113, %v1086, 0.0
  %v1098 = vadd.f32 %v1096, %v1097
  %v1099 = vsel %vm113, %v1087, 0.0
  %v1100 = vadd.f32 %v1098, %v1099
  %v1101 = vsel %vm113, %v1088, 0.0
  %v1102 = vadd.f32 %v1100, %v1101
  %v1103 = vsel %vm113, %v1089, 0.0
  %v1104 = vadd.f32 %v1102, %v1103
  %v1105 = vrot.slane %v1104, 4
  %v1106 = vadd.f32 %v1104, %v1105
  %v1107 = vrot.slane %v1106, 2
  %v1108 = vadd.f32 %v1106, %v1107
  %v1109 = vrot.slane %v1108, 1
  %v1110 = vadd.f32 %v1108, %v1109
  %v1111 = vmul.f32 %v1081, 0.015625
  %v1112 = vmul.f32 %v1110, 0.015625
  %v1113 = vmul.f32 %v1111, %v1111
  %v1114 = vsub.f32 %v1112, %v1113
  %v1115 = vadd.f32 %v1114, 1e-05
  %v1116 = vrsqrt.pop %v1115
  %v1117 = vld [vmem:[%s5] sm:$0x1]
  %v1118 = vmul.f32 %v1116, %v1117
  %v1119 = vld [vmem:[%s6] sm:$0x1]
  %v1120 = vmul.f32 %v1111, %v1118
  %v1121 = vsub.f32 %v1119, %v1120
  %v1122 = vlaneseq
  %v1123 = vshrl.u32 %v1122, 7
  %v1124 = vsub.s32 0, %v1123
  %v1125 = vrot.slane %v1118, %v1124
  %v1126 = vmul.f32 %v1053, %v1125
  %v1127 = vmul.f32 %v1054, %v1125
  %v1128 = vmul.f32 %v1055, %v1125
  %v1129 = vmul.f32 %v1056, %v1125
  %v1130 = vmul.f32 %v1057, %v1125
  %v1131 = vmul.f32 %v1058, %v1125
  %v1132 = vmul.f32 %v1059, %v1125
  %v1133 = vmul.f32 %v1060, %v1125
  %v1135 = vlaneseq
  %v1136 = vshrl.u32 %v1135, 7
  %v1137 = vsub.s32 0, %v1136
  %v1138 = vrot.slane %v1121, %v1137
  %v1140 = vadd.f32 %v1126, %v1138
  %v1141 = vadd.f32 %v1127, %v1138
  %v1142 = vadd.f32 %v1128, %v1138
  %v1143 = vadd.f32 %v1129, %v1138
  %v1144 = vadd.f32 %v1130, %v1138
  %v1145 = vadd.f32 %v1131, %v1138
  %v1146 = vadd.f32 %v1132, %v1138
  %v1147 = vadd.f32 %v1133, %v1138
  %vm1148 = vcmp.gt.f32.partialorder %v1140, 0.0
  %vm1149 = vcmp.gt.f32.partialorder %v1141, 0.0
  %vm1150 = vcmp.gt.f32.partialorder %v1142, 0.0
  %vm1151 = vcmp.gt.f32.partialorder %v1143, 0.0
  %vm1152 = vcmp.gt.f32.partialorder %v1144, 0.0
  %vm1153 = vcmp.gt.f32.partialorder %v1145, 0.0
  %vm1154 = vcmp.gt.f32.partialorder %v1146, 0.0
  %vm1155 = vcmp.gt.f32.partialorder %v1147, 0.0
  %v1156 = vmul.f32 %v1140, 0.2
  %v1157 = vmul.f32 %v1141, 0.2
  %v1158 = vmul.f32 %v1142, 0.2
  %v1159 = vmul.f32 %v1143, 0.2
  %v1160 = vmul.f32 %v1144, 0.2
  %v1161 = vmul.f32 %v1145, 0.2
  %v1162 = vmul.f32 %v1146, 0.2
  %v1163 = vmul.f32 %v1147, 0.2
  %v1164 = vsel %vm1148, %v1140, %v1156
  %v1165 = vsel %vm1149, %v1141, %v1157
  %v1166 = vsel %vm1150, %v1142, %v1158
  %v1167 = vsel %vm1151, %v1143, %v1159
  %v1168 = vsel %vm1152, %v1144, %v1160
  %v1169 = vsel %vm1153, %v1145, %v1161
  %v1170 = vsel %vm1154, %v1146, %v1162
  %v1171 = vsel %vm1155, %v1147, %v1163
  %1172 = vst.msk [vmem:[#allocation4 + $0x1] sm:$0xff] %vm113, %v1164
  %1173 = vst.msk [vmem:[#allocation4 + $0x9] sm:$0xff] %vm113, %v1165
  %1174 = vst.msk [vmem:[#allocation4 + $0x11] sm:$0xff] %vm113, %v1166
  %1175 = vst.msk [vmem:[#allocation4 + $0x19] sm:$0xff] %vm113, %v1167
  %1176 = vst.msk [vmem:[#allocation4 + $0x29] sm:$0xff] %vm113, %v1168
  %1177 = vst.msk [vmem:[#allocation4 + $0x31] sm:$0xff] %vm113, %v1169
  %1178 = vst.msk [vmem:[#allocation4 + $0x39] sm:$0xff] %vm113, %v1170
  %1179 = vst.msk [vmem:[#allocation4 + $0x41] sm:$0xff] %vm113, %v1171
  %v1180 = vld [vmem:[%s8] sm:$0x1]
  %v1181 = vld [vmem:[#allocation4] ss:$2 sm:$0xff]
  %s1182 = scalar_lea.vmem [#allocation4], 16
  %v1183 = vld [vmem:[%s1182] ss:$2 sm:$0xff]
  %s1184 = scalar_lea.vmem [#allocation4], 40
  %v1185 = vld [vmem:[%s1184] ss:$2 sm:$0xff]
  %s1186 = scalar_lea.vmem [#allocation4], 56
  %v1187 = vld [vmem:[%s1186] ss:$2 sm:$0xff]
  %v1188 = vpack.c.bf16 %v1183, %v1181
  %v1189 = vpack.c.bf16 %v1187, %v1185
  %v1190 = vld [vmem:[%s7] sm:$0xf]
  %v1191 = vld [vmem:[%s7 + $0x4] sm:$0xf]
  %v1192 = vld [vmem:[%s7 + $0x8] sm:$0xf]
  %v1193 = vld [vmem:[%s7 + $0xc] sm:$0xf]
  %v1198 = vunpack.c.l.b16 %v1190
  %v1199 = vunpack.c.l.b16 %v1191
  %v1200 = vunpack.c.l.b16 %v1192
  %v1201 = vunpack.c.l.b16 %v1193
  %v1202 = vpack.c.b16 %v1199, %v1198
  %v1203 = vpack.c.b16 %v1201, %v1200
  %v1207 = vsel %vm113, %v1188, 0
  %v1210 = vsel %vm113, %v1189, 0
  %1212 = vmatprep.subr.bf16.mxu0 0
  %1213 = vmatpush1.bf16.msra.mxu0 %v1202
  %1214 = vmatprep.subr.bf16.mxu0 0
  %1215 = vmatpush1.bf16.msra.mxu0 %v1203
  %1216 = vmatprep.subr.bf16.mxu0 0
  %1217 = vmatpush1.bf16.msra.mxu0 0
  %1218 = vmatprep.subr.bf16.mxu0 0
  %1219 = vmatpush1.bf16.msra.mxu0 0
  %1220 = vmatprep.subr.bf16.mxu0 0
  %1221 = vmatpush1.bf16.msra.mxu0 0
  %1222 = vmatprep.subr.bf16.mxu0 0
  %1223 = vmatpush1.bf16.msra.mxu0 0
  %1224 = vmatprep.subr.bf16.mxu0 0
  %1225 = vmatpush1.bf16.msra.mxu0 0
  %1226 = vmatprep.subr.bf16.mxu0 0
  %1227 = vmatpush1.bf16.msra.mxu0 0
  %1228 = vmatprep.subr.bf16.mxu0 0
  %1229 = vmatpush1.bf16.msra.mxu0 0
  %1230 = vmatprep.subr.bf16.mxu0 0
  %1231 = vmatpush1.bf16.msra.mxu0 0
  %1232 = vmatprep.subr.bf16.mxu0 0
  %1233 = vmatpush1.bf16.msra.mxu0 0
  %1234 = vmatprep.subr.bf16.mxu0 0
  %1235 = vmatpush1.bf16.msra.mxu0 0
  %1236 = vmatprep.subr.bf16.mxu0 0
  %1237 = vmatpush1.bf16.msra.mxu0 0
  %1238 = vmatprep.subr.bf16.mxu0 0
  %1239 = vmatpush1.bf16.msra.mxu0 0
  %1240 = vmatprep.subr.bf16.mxu0 0
  %1241 = vmatpush1.bf16.msra.mxu0 0
  %1242 = vmatprep.subr.bf16.mxu0 0
  %1243 = vmatpush1.bf16.msra.mxu0 0
  %1244 = vmatprep.mubr.bf16.mxu0 0
  %1245 = vmatmul.mubr.bf16.gmra.mrb[0].mxu0 %v1207
  %v1246 = vpop.f32.mrb[0].mxu0
  %v1247 = vadd.f32 0.0, %v1246
  %v1248 = vpop.f32.mrb[0].mxu0
  %v1249 = vpop.f32.mrb[0].mxu0
  %v1250 = vadd.f32 0.0, %v1249
  %v1251 = vpop.f32.mrb[0].mxu0
  %1252 = vmatprep.mubr.bf16.mxu0 0
  %1253 = vmatmul.mubr.bf16.gmra.mrb[0].mxu0 %v1210
  %v1254 = vpop.f32.mrb[0].mxu0
  %v1255 = vadd.f32 0.0, %v1254
  %v1256 = vpop.f32.mrb[0].mxu0
  %v1257 = vpop.f32.mrb[0].mxu0
  %v1258 = vadd.f32 0.0, %v1257
  %v1259 = vpop.f32.mrb[0].mxu0
  %1260 = vdwg.mxu0
  %v1262 = vlaneseq
  %v1263 = vshrl.u32 %v1262, 7
  %v1264 = vsub.s32 0, %v1263
  %v1265 = vrot.slane %v1180, %v1264
  %v1267 = vadd.f32 %v1265, %v1247
  %v1268 = vadd.f32 %v1265, %v1250
  %v1269 = vadd.f32 %v1265, %v1255
  %v1270 = vadd.f32 %v1265, %v1258
  %s1271 = scalar_lea.vmem [#allocation4], 1
  %v1272 = vld [vmem:[%s1271] ss:$2 sm:$0xff]
  %s1273 = scalar_lea.vmem [#allocation4], 17
  %v1274 = vld [vmem:[%s1273] ss:$2 sm:$0xff]
  %s1275 = scalar_lea.vmem [#allocation4], 41
  %v1276 = vld [vmem:[%s1275] ss:$2 sm:$0xff]
  %s1277 = scalar_lea.vmem [#allocation4], 57
  %v1278 = vld [vmem:[%s1277] ss:$2 sm:$0xff]
  %v1279 = vpack.c.bf16 %v1274, %v1272
  %v1280 = vpack.c.bf16 %v1278, %v1276
  %s1281 = scalar_lea.vmem %s7, 16
  %v1282 = vld [vmem:[%s1281] sm:$0xf]
  %v1283 = vld [vmem:[%s1281 + $0x4] sm:$0xf]
  %v1284 = vld [vmem:[%s1281 + $0x8] sm:$0xf]
  %v1285 = vld [vmem:[%s1281 + $0xc] sm:$0xf]
  %v1290 = vunpack.c.l.b16 %v1282
  %v1291 = vunpack.c.l.b16 %v1283
  %v1292 = vunpack.c.l.b16 %v1284
  %v1293 = vunpack.c.l.b16 %v1285
  %v1294 = vpack.c.b16 %v1291, %v1290
  %v1295 = vpack.c.b16 %v1293, %v1292
  %v1299 = vsel %vm113, %v1279, 0
  %v1302 = vsel %vm113, %v1280, 0
  %1304 = vmatprep.subr.bf16.mxu0 0
  %1305 = vmatpush1.bf16.msra.mxu0 %v1294
  %1306 = vmatprep.subr.bf16.mxu0 0
  %1307 = vmatpush1.bf16.msra.mxu0 %v1295
  %1308 = vmatprep.subr.bf16.mxu0 0
  %1309 = vmatpush1.bf16.msra.mxu0 0
  %1310 = vmatprep.subr.bf16.mxu0 0
  %1311 = vmatpush1.bf16.msra.mxu0 0
  %1312 = vmatprep.subr.bf16.mxu0 0
  %1313 = vmatpush1.bf16.msra.mxu0 0
  %1314 = vmatprep.subr.bf16.mxu0 0
  %1315 = vmatpush1.bf16.msra.mxu0 0
  %1316 = vmatprep.subr.bf16.mxu0 0
  %1317 = vmatpush1.bf16.msra.mxu0 0
  %1318 = vmatprep.subr.bf16.mxu0 0
  %1319 = vmatpush1.bf16.msra.mxu0 0
  %1320 = vmatprep.subr.bf16.mxu0 0
  %1321 = vmatpush1.bf16.msra.mxu0 0
  %1322 = vmatprep.subr.bf16.mxu0 0
  %1323 = vmatpush1.bf16.msra.mxu0 0
  %1324 = vmatprep.subr.bf16.mxu0 0
  %1325 = vmatpush1.bf16.msra.mxu0 0
  %1326 = vmatprep.subr.bf16.mxu0 0
  %1327 = vmatpush1.bf16.msra.mxu0 0
  %1328 = vmatprep.subr.bf16.mxu0 0
  %1329 = vmatpush1.bf16.msra.mxu0 0
  %1330 = vmatprep.subr.bf16.mxu0 0
  %1331 = vmatpush1.bf16.msra.mxu0 0
  %1332 = vmatprep.subr.bf16.mxu0 0
  %1333 = vmatpush1.bf16.msra.mxu0 0
  %1334 = vmatprep.subr.bf16.mxu0 0
  %1335 = vmatpush1.bf16.msra.mxu0 0
  %1336 = vmatprep.mubr.bf16.mxu0 0
  %1337 = vmatmul.mubr.bf16.gmra.mrb[0].mxu0 %v1299
  %v1338 = vpop.f32.mrb[0].mxu0
  %v1339 = vadd.f32 0.0, %v1338
  %v1340 = vpop.f32.mrb[0].mxu0
  %v1341 = vpop.f32.mrb[0].mxu0
  %v1342 = vadd.f32 0.0, %v1341
  %v1343 = vpop.f32.mrb[0].mxu0
  %1344 = vmatprep.mubr.bf16.mxu0 0
  %1345 = vmatmul.mubr.bf16.gmra.mrb[0].mxu0 %v1302
  %v1346 = vpop.f32.mrb[0].mxu0
  %v1347 = vadd.f32 0.0, %v1346
  %v1348 = vpop.f32.mrb[0].mxu0
  %v1349 = vpop.f32.mrb[0].mxu0
  %v1350 = vadd.f32 0.0, %v1349
  %v1351 = vpop.f32.mrb[0].mxu0
  %1352 = vdwg.mxu0
  %v1353 = vadd.f32 %v1267, %v1339
  %v1354 = vadd.f32 %v1268, %v1342
  %v1355 = vadd.f32 %v1269, %v1347
  %v1356 = vadd.f32 %v1270, %v1350
  %s1357 = scalar_lea.vmem [#allocation4], 2
  %v1358 = vld [vmem:[%s1357] ss:$2 sm:$0xff]
  %s1359 = scalar_lea.vmem [#allocation4], 18
  %v1360 = vld [vmem:[%s1359] ss:$2 sm:$0xff]
  %s1361 = scalar_lea.vmem [#allocation4], 42
  %v1362 = vld [vmem:[%s1361] ss:$2 sm:$0xff]
  %s1363 = scalar_lea.vmem [#allocation4], 58
  %v1364 = vld [vmem:[%s1363] ss:$2 sm:$0xff]
  %v1365 = vpack.c.bf16 %v1360, %v1358
  %v1366 = vpack.c.bf16 %v1364, %v1362
  %s1367 = scalar_lea.vmem %s7, 32
  %v1368 = vld [vmem:[%s1367] sm:$0xf]
  %v1369 = vld [vmem:[%s1367 + $0x4] sm:$0xf]
  %v1370 = vld [vmem:[%s1367 + $0x8] sm:$0xf]
  %v1371 = vld [vmem:[%s1367 + $0xc] sm:$0xf]
  %v1376 = vunpack.c.l.b16 %v1368
  %v1377 = vunpack.c.l.b16 %v1369
  %v1378 = vunpack.c.l.b16 %v1370
  %v1379 = vunpack.c.l.b16 %v1371
  %v1380 = vpack.c.b16 %v1377, %v1376
  %v1381 = vpack.c.b16 %v1379, %v1378
  %v1385 = vsel %vm113, %v1365, 0
  %v1388 = vsel %vm113, %v1366, 0
  %1390 = vmatprep.subr.bf16.mxu0 0
  %1391 = vmatpush1.bf16.msra.mxu0 %v1380
  %1392 = vmatprep.subr.bf16.mxu0 0
  %1393 = vmatpush1.bf16.msra.mxu0 %v1381
  %1394 = vmatprep.subr.bf16.mxu0 0
  %1395 = vmatpush1.bf16.msra.mxu0 0
  %1396 = vmatprep.subr.bf16.mxu0 0
  %1397 = vmatpush1.bf16.msra.mxu0 0
  %1398 = vmatprep.subr.bf16.mxu0 0
  %1399 = vmatpush1.bf16.msra.mxu0 0
  %1400 = vmatprep.subr.bf16.mxu0 0
  %1401 = vmatpush1.bf16.msra.mxu0 0
  %1402 = vmatprep.subr.bf16.mxu0 0
  %1403 = vmatpush1.bf16.msra.mxu0 0
  %1404 = vmatprep.subr.bf16.mxu0 0
  %1405 = vmatpush1.bf16.msra.mxu0 0
  %1406 = vmatprep.subr.bf16.mxu0 0
  %1407 = vmatpush1.bf16.msra.mxu0 0
  %1408 = vmatprep.subr.bf16.mxu0 0
  %1409 = vmatpush1.bf16.msra.mxu0 0
  %1410 = vmatprep.subr.bf16.mxu0 0
  %1411 = vmatpush1.bf16.msra.mxu0 0
  %1412 = vmatprep.subr.bf16.mxu0 0
  %1413 = vmatpush1.bf16.msra.mxu0 0
  %1414 = vmatprep.subr.bf16.mxu0 0
  %1415 = vmatpush1.bf16.msra.mxu0 0
  %1416 = vmatprep.subr.bf16.mxu0 0
  %1417 = vmatpush1.bf16.msra.mxu0 0
  %1418 = vmatprep.subr.bf16.mxu0 0
  %1419 = vmatpush1.bf16.msra.mxu0 0
  %1420 = vmatprep.subr.bf16.mxu0 0
  %1421 = vmatpush1.bf16.msra.mxu0 0
  %1422 = vmatprep.mubr.bf16.mxu0 0
  %1423 = vmatmul.mubr.bf16.gmra.mrb[0].mxu0 %v1385
  %v1424 = vpop.f32.mrb[0].mxu0
  %v1425 = vadd.f32 0.0, %v1424
  %v1426 = vpop.f32.mrb[0].mxu0
  %v1427 = vpop.f32.mrb[0].mxu0
  %v1428 = vadd.f32 0.0, %v1427
  %v1429 = vpop.f32.mrb[0].mxu0
  %1430 = vmatprep.mubr.bf16.mxu0 0
  %1431 = vmatmul.mubr.bf16.gmra.mrb[0].mxu0 %v1388
  %v1432 = vpop.f32.mrb[0].mxu0
  %v1433 = vadd.f32 0.0, %v1432
  %v1434 = vpop.f32.mrb[0].mxu0
  %v1435 = vpop.f32.mrb[0].mxu0
  %v1436 = vadd.f32 0.0, %v1435
  %v1437 = vpop.f32.mrb[0].mxu0
  %1438 = vdwg.mxu0
  %v1439 = vadd.f32 %v1353, %v1425
  %v1440 = vadd.f32 %v1354, %v1428
  %v1441 = vadd.f32 %v1355, %v1433
  %v1442 = vadd.f32 %v1356, %v1436
  %vm1443 = vcmask 523264
  %v1444 = vsel %vm1443, %v1439, 0.0
  %v1445 = vsel %vm1443, %v1440, 0.0
  %v1446 = vadd.f32 %v1444, %v1445
  %v1447 = vsel %vm1443, %v1441, 0.0
  %v1448 = vadd.f32 %v1446, %v1447
  %v1449 = vsel %vm1443, %v1442, 0.0
  %v1450 = vadd.f32 %v1448, %v1449
  %v1451 = vrot.slane %v1450, 4
  %v1452 = vadd.f32 %v1450, %v1451
  %v1453 = vrot.slane %v1452, 2
  %v1454 = vadd.f32 %v1452, %v1453
  %v1455 = vrot.slane %v1454, 1
  %v1456 = vadd.f32 %v1454, %v1455
  %v1457 = vmul.f32 %v1439, %v1439
  %v1458 = vmul.f32 %v1440, %v1440
  %v1459 = vmul.f32 %v1441, %v1441
  %v1460 = vmul.f32 %v1442, %v1442
  %v1461 = vsel %vm1443, %v1457, 0.0
  %v1462 = vsel %vm1443, %v1458, 0.0
  %v1463 = vadd.f32 %v1461, %v1462
  %v1464 = vsel %vm1443, %v1459, 0.0
  %v1465 = vadd.f32 %v1463, %v1464
  %v1466 = vsel %vm1443, %v1460, 0.0
  %v1467 = vadd.f32 %v1465, %v1466
  %v1468 = vrot.slane %v1467, 4
  %v1469 = vadd.f32 %v1467, %v1468
  %v1470 = vrot.slane %v1469, 2
  %v1471 = vadd.f32 %v1469, %v1470
  %v1472 = vrot.slane %v1471, 1
  %v1473 = vadd.f32 %v1471, %v1472
  %v1474 = vmul.f32 %v1456, 0.03125
  %v1475 = vmul.f32 %v1473, 0.03125
  %v1476 = vmul.f32 %v1474, %v1474
  %v1477 = vsub.f32 %v1475, %v1476
  %v1478 = vadd.f32 %v1477, 1e-05
  %v1479 = vrsqrt.pop %v1478
  %v1480 = vld [vmem:[%s9] sm:$0x1]
  %v1481 = vmul.f32 %v1479, %v1480
  %v1482 = vld [vmem:[%s10] sm:$0x1]
  %v1483 = vmul.f32 %v1474, %v1481
  %v1484 = vsub.f32 %v1482, %v1483
  %v1485 = vlaneseq
  %v1486 = vshrl.u32 %v1485, 7
  %v1487 = vsub.s32 0, %v1486
  %v1488 = vrot.slane %v1481, %v1487
  %v1489 = vmul.f32 %v1439, %v1488
  %v1490 = vmul.f32 %v1440, %v1488
  %v1491 = vmul.f32 %v1441, %v1488
  %v1492 = vmul.f32 %v1442, %v1488
  %v1494 = vlaneseq
  %v1495 = vshrl.u32 %v1494, 7
  %v1496 = vsub.s32 0, %v1495
  %v1497 = vrot.slane %v1484, %v1496
  %v1499 = vadd.f32 %v1489, %v1497
  %v1500 = vadd.f32 %v1490, %v1497
  %v1501 = vadd.f32 %v1491, %v1497
  %v1502 = vadd.f32 %v1492, %v1497
  %vm1503 = vcmp.gt.f32.partialorder %v1499, 0.0
  %vm1504 = vcmp.gt.f32.partialorder %v1500, 0.0
  %vm1505 = vcmp.gt.f32.partialorder %v1501, 0.0
  %vm1506 = vcmp.gt.f32.partialorder %v1502, 0.0
  %v1507 = vmul.f32 %v1499, 0.2
  %v1508 = vmul.f32 %v1500, 0.2
  %v1509 = vmul.f32 %v1501, 0.2
  %v1510 = vmul.f32 %v1502, 0.2
  %v1511 = vsel %vm1503, %v1499, %v1507
  %v1512 = vsel %vm1504, %v1500, %v1508
  %v1513 = vsel %vm1505, %v1501, %v1509
  %v1514 = vsel %vm1506, %v1502, %v1510
  %1515 = vst.msk [vmem:[#allocation5] sm:$0xff] %vm1443, %v1511
  %1516 = vst.msk [vmem:[#allocation5 + $0x8] sm:$0xff] %vm1443, %v1512
  %1517 = vst.msk [vmem:[#allocation5 + $0x10] sm:$0xff] %vm1443, %v1513
  %1518 = vst.msk [vmem:[#allocation5 + $0x18] sm:$0xff] %vm1443, %v1514
  %v1519 = vld [vmem:[#allocation6] sm:$0x1]
  %v1520 = vld [vmem:[#allocation5] ss:$2 sm:$0x7f]
  %s1521 = scalar_lea.vmem [#allocation5], 16
  %v1522 = vld [vmem:[%s1521] ss:$2 sm:$0x7f]
  %v1523 = vld [vmem:[%s11] sm:$0x1]
  %v1525 = vlaneseq
  %v1526 = vshrl.u32 %v1525, 7
  %v1527 = vsub.s32 0, %v1526
  %v1528 = vrot.slane %v1523, %v1527
  %v1530 = vmul.f32 %v1520, %v1528
  %v1531 = vmul.f32 %v1522, %v1528
  %vm1532 = vcmask 522240
  %v1533 = vsel %vm1532, %v1530, 0.0
  %1534 = vadd.xlane.f32.xlu0 %v1533
  %v1535 = vpop.xlane.xlu0 %1534
  %v1536 = vsel %vm1532, %v1531, 0.0
  %1537 = vadd.xlane.f32.xlu0 %v1536
  %v1538 = vpop.xlane.xlu0 %1537
  %v1540 = vlaneseq
  %v1541 = vshrl.u32 %v1540, 7
  %v1542 = vsub.s32 0, %v1541
  %v1543 = vrot.slane %v1519, %v1542
  %1544 = vset.pattern.permute.xlu0 0
  %1545 = vperm.xlu0 %1544, %v1543
  %v1546 = vpop.permute.xlu0 %1545
  %v1548 = vadd.f32 %v1546, %v1535
  %v1549 = vadd.f32 %v1546, %v1538
  %s1550 = scalar_lea.vmem [#allocation5], 1
  %v1551 = vld [vmem:[%s1550] ss:$2 sm:$0x7f]
  %s1552 = scalar_lea.vmem [#allocation5], 17
  %v1553 = vld [vmem:[%s1552] ss:$2 sm:$0x7f]
  %s1554 = scalar_lea.vmem %s11, 1
  %v1555 = vld [vmem:[%s1554] sm:$0x1]
  %v1557 = vlaneseq
  %v1558 = vshrl.u32 %v1557, 7
  %v1559 = vsub.s32 0, %v1558
  %v1560 = vrot.slane %v1555, %v1559
  %v1562 = vmul.f32 %v1551, %v1560
  %v1563 = vmul.f32 %v1553, %v1560
  %v1564 = vsel %vm1532, %v1562, 0.0
  %1565 = vadd.xlane.f32.xlu0 %v1564
  %v1566 = vpop.xlane.xlu0 %1565
  %v1567 = vsel %vm1532, %v1563, 0.0
  %1568 = vadd.xlane.f32.xlu0 %v1567
  %v1569 = vpop.xlane.xlu0 %1568
  %v1570 = vadd.f32 %v1548, %v1566
  %v1571 = vadd.f32 %v1549, %v1569
  %s1572 = scalar_lea.vmem [#allocation5], 2
  %v1573 = vld [vmem:[%s1572] ss:$2 sm:$0x7f]
  %s1574 = scalar_lea.vmem [#allocation5], 18
  %v1575 = vld [vmem:[%s1574] ss:$2 sm:$0x7f]
  %s1576 = scalar_lea.vmem %s11, 2
  %v1577 = vld [vmem:[%s1576] sm:$0x1]
  %v1579 = vlaneseq
  %v1580 = vshrl.u32 %v1579, 7
  %v1581 = vsub.s32 0, %v1580
  %v1582 = vrot.slane %v1577, %v1581
  %v1584 = vmul.f32 %v1573, %v1582
  %v1585 = vmul.f32 %v1575, %v1582
  %v1586 = vsel %vm1532, %v1584, 0.0
  %1587 = vadd.xlane.f32.xlu0 %v1586
  %v1588 = vpop.xlane.xlu0 %1587
  %v1589 = vsel %vm1532, %v1585, 0.0
  %1590 = vadd.xlane.f32.xlu0 %v1589
  %v1591 = vpop.xlane.xlu0 %1590
  %v1592 = vadd.f32 %v1570, %v1588
  %v1593 = vadd.f32 %v1571, %v1591
  %v1596 = vlaneseq
  %v1597 = vand.u32 %v1596, 127
  %v1598 = vlaneseq
  %v1599 = vshrl.u32 %v1598, 7
  %v1600 = vsub.s32 %v1597, %v1599
  %v1601 = vrot.slane %v1592, %v1600
  %v1602 = vlaneseq
  %v1603 = vshrl.u32 %v1602, 7
  %v1604 = vsub.s32 %v1597, %v1603
  %v1605 = vrot.slane %v1593, %v1604
  %vm1606 = vcmask 1041409
  %v1607 = vsel %vm1606, %v1605, %v1601
  %vm1609 = vcmask 50176
  %v1610 = vsel %vm1609, %v1607, 0.0
  %1611 = vadd.xlane.f32.xlu0 %v1610
  %v1612 = vpop.xlane.xlu0 %1611
  %v1613 = vmul.f32 %v1612, 0.14285715
  %v1614 = vld [vmem:[#allocation7] sm:$0x1]
  %v1616 = vlaneseq
  %v1617 = vshrl.u32 %v1616, 7
  %v1618 = vsub.s32 0, %v1617
  %v1619 = vrot.slane %v1614, %v1618
  %v1621 = vmul.f32 %v1613, %v1619
  %v1622 = vld [vmem:[#allocation8] sm:$0x1]
  %v1624 = vlaneseq
  %v1625 = vshrl.u32 %v1624, 7
  %v1626 = vsub.s32 0, %v1625
  %v1627 = vrot.slane %v1622, %v1626
  %v1629 = vadd.f32 %v1621, %v1627
  %v1630 = vsub.f32 0.0, %v1629
  %v1631 = vmul.f32 %v1630, 1.442695
  %v1632 = vpow.pop %v1631
  %v1633 = vadd.f32 %v1632, 1.0
  %v1634 = vrcp.pop %v1633
  %v1635 = vmul.f32 1.0, %v1634
  %1636 = vst.msk [vmem:[%s15] sm:$0x3] %vm74, %v1635
  // Predicated region
  $region62: #{discriminator_forward.1} parent=0 // pred_check
    _
  $region63: #{discriminator_forward.1} parent=0 // pred_check_branch
    %1638 = sbr.rel (0) target = $region65
  $region64: #{discriminator_forward.1} parent=0 // pred_region
    _
  $region65: #{discriminator_forward.1} parent=0 // pred_fallthru
    _
  // Predicated region
  $region66: #{discriminator_forward.1} parent=0 // pred_check
    _
  $region67: #{discriminator_forward.1} parent=0 // pred_check_branch
    %1640 = sbr.rel (0) target = $region69
  $region68: #{discriminator_forward.1} parent=0 // pred_region
    _
  $region69: #{discriminator_forward.1} parent=0 // pred_fallthru
    _

</llo_original>
